<compile_context>
chip_gen: v7x
topology: tpu7x:2x2x1
jax: 0.10.0
libtpu: 0.0.40
codegen_flags: <defaults>
</compile_context>

<pallas_src>
import jax
import jax.numpy as jnp
from jax import lax
from jax.experimental import pallas as pl
from jax.experimental.pallas import tpu as pltpu

# small synthetic config (stand-in for hidden_size=768 KoBERT)
B, S, H, NH, C, V = 2, 8, 32, 2, 3, 64
DH = H // NH
FF = 4 * H
C_PAD = 128        # lane-dense classifier output width (sliced back to C in the wrapper)
OUT_SUB = 8        # sublane-padded output rows -> full unmasked (8,128) vreg store
DR_RATE = 0.5      # nn.Dropout(p=dr_rate) is identity in eval mode (see kernel)

# rows of the packed (1, H) bias / layernorm-parameter table
_LN_E_G, _LN_E_B, _B_O, _LN1_G, _LN1_B, _B_2, _LN2_G, _LN2_B, _B_P = range(9)


def bert_classifier_kernel(tok_sref, seg_sref, vlen_sref,           # SMEM scalar-prefetch
                           tok_emb, seg_emb, pos_emb, vecs,         # VMEM, resident
                           wqkv, bqkv, wo, w1, b1, w2, wp, wc, bc,  # VMEM, resident
                           out_ref, e_scratch):
    """One grid step processes one batch element (grid axis is 'parallel')."""
    b = pl.program_id(0)
    f32, bf16 = jnp.float32, jnp.bfloat16

    def vec(i):                        # (1, H) row of the packed bias/LN table
        return vecs[i:i + 1, :]

    def layernorm(x, g, beta):
        mu = jnp.mean(x, axis=-1, keepdims=True)
        var = jnp.mean((x - mu) ** 2, axis=-1, keepdims=True)
        return (x - mu) * lax.rsqrt(var + 1e-12) * g + beta

    def mm(x, w_ref):                  # bf16 MXU operands, f32 accumulation
        return jnp.dot(x.astype(bf16), w_ref[...], preferred_element_type=f32)

    # ---- embeddings: gather rows by SMEM token / segment ids (no one-hot matmul) ----
    # TODO(synk): at real KoBERT scale (V~8000, 12 layers) stream embedding/weight tiles
    # HBM->VMEM via BlockSpec index_maps instead of keeping everything resident.
    for s in range(S):                 # static unroll; S is small
        tid = tok_sref[b, s]
        sid = seg_sref[b, s]
        e_scratch[s:s + 1, :] = (tok_emb[pl.ds(tid, 1), :] +
                                 seg_emb[pl.ds(sid, 1), :])
    x = layernorm(e_scratch[...] + pos_emb[...], vec(_LN_E_G), vec(_LN_E_B))   # (S,H) f32

    # ---- gen_attention_mask: additive key bias from valid_length (built once) ----
    k_pos = lax.broadcasted_iota(jnp.int32, (1, S), 1)
    key_bias = jnp.where(k_pos < vlen_sref[b], 0.0, -1e9).astype(f32)          # (1,S)

    # ---- fused QKV projection + batched per-head attention ----
    qkv = mm(x, wqkv) + bqkv[...]                                              # (S,3H)

    def heads(z):                      # (S,H) -> (NH,S,DH)
        return jnp.transpose(z.reshape(S, NH, DH), (1, 0, 2))

    q = heads(qkv[:, 0 * H:1 * H])
    k = heads(qkv[:, 1 * H:2 * H])
    v = heads(qkv[:, 2 * H:3 * H])

    scale = 1.0 / (DH ** 0.5)
    scores = jnp.einsum('hqd,hkd->hqk', q.astype(bf16), k.astype(bf16),
                        preferred_element_type=f32) * scale                    # (NH,S,S)
    scores = scores + key_bias                                                 # mask padded keys
    scores = scores - jnp.max(scores, axis=-1, keepdims=True)
    p = jnp.exp(scores)
    p = p * pl.reciprocal(jnp.sum(p, axis=-1, keepdims=True), approx=True)

    ctx = jnp.einsum('hqk,hkd->hqd', p.astype(bf16), v.astype(bf16),
                     preferred_element_type=f32)                               # (NH,S,DH)
    ctx = jnp.transpose(ctx, (1, 0, 2)).reshape(S, H)

    x = layernorm(x + mm(ctx, wo) + vec(_B_O), vec(_LN1_G), vec(_LN1_B))

    # ---- feed-forward ----
    h1 = jax.nn.gelu(mm(x, w1) + b1[...], approximate=True)                    # (S,FF)
    x = layernorm(x + mm(h1, w2) + vec(_B_2), vec(_LN2_G), vec(_LN2_B))

    # ---- pooler: tanh(dense(CLS row)) ----
    pooler = jnp.tanh(mm(x[0:1, :], wp) + vec(_B_P))                           # (1,H)

    # dropout(p=DR_RATE): identity in eval mode (PyTorch nn.Dropout eval semantics)
    # TODO(synk): training-mode stochastic dropout via pltpu.prng_* if needed.

    # ---- classifier into a lane-dense (8,128) padded tile (sliced in wrapper) ----
    logits = mm(pooler, wc) + bc[...]                                          # (1,C_PAD)
    out_ref[...] = jnp.broadcast_to(logits, (OUT_SUB, C_PAD)).reshape(1, OUT_SUB, C_PAD)


def init_params(key):
    ks = jax.random.split(key, 12)
    s = 0.02
    f32 = jnp.float32
    return [
        jax.random.normal(ks[0], (V, H), f32) * s,                              # tok_emb
        jax.random.normal(ks[1], (2, H), f32) * s,                              # seg_emb
        jax.random.normal(ks[2], (S, H), f32) * s,                              # pos_emb
        jnp.ones((1, H), f32), jnp.zeros((1, H), f32),                          # ln_e_g, ln_e_b
        jax.random.normal(ks[3], (H, H), f32) * s, jnp.zeros((1, H), f32),      # wq, bq
        jax.random.normal(ks[4], (H, H), f32) * s, jnp.zeros((1, H), f32),      # wk, bk
        jax.random.normal(ks[5], (H, H), f32) * s, jnp.zeros((1, H), f32),      # wv, bv
        jax.random.normal(ks[6], (H, H), f32) * s, jnp.zeros((1, H), f32),      # wo, bo
        jnp.ones((1, H), f32), jnp.zeros((1, H), f32),                          # ln1_g, ln1_b
        jax.random.normal(ks[7], (H, FF), f32) * s, jnp.zeros((1, FF), f32),    # w1, b1
        jax.random.normal(ks[8], (FF, H), f32) * s, jnp.zeros((1, H), f32),     # w2, b2
        jnp.ones((1, H), f32), jnp.zeros((1, H), f32),                          # ln2_g, ln2_b
        jax.random.normal(ks[9], (H, H), f32) * s, jnp.zeros((1, H), f32),      # wp, bp (pooler)
        jax.random.normal(ks[10], (H, C), f32) * s, jnp.zeros((1, C), f32),     # wc, bc (classifier)
    ]


def pack_params(params):
    """Fuse QKV, pack small vectors, pad classifier to lane-dense, cast matmul weights to bf16."""
    (tok_emb, seg_emb, pos_emb, ln_e_g, ln_e_b,
     wq, bq, wk, bk, wv, bv, wo, bo, ln1_g, ln1_b,
     w1, b1, w2, b2, ln2_g, ln2_b,
     wp, bp, wc, bc) = params
    bf16 = jnp.bfloat16
    wqkv = jnp.concatenate([wq, wk, wv], axis=1).astype(bf16)                   # (H, 3H)
    bqkv = jnp.concatenate([bq, bk, bv], axis=1)                                # (1, 3H) f32
    vecs = jnp.concatenate([ln_e_g, ln_e_b, bo, ln1_g, ln1_b,
                            b2, ln2_g, ln2_b, bp], axis=0)                      # (9, H) f32
    wc_pad = jnp.zeros((H, C_PAD), jnp.float32).at[:, :C].set(wc).astype(bf16)  # (H, 128)
    bc_pad = jnp.zeros((1, C_PAD), jnp.float32).at[:, :C].set(bc)               # (1, 128)
    return [tok_emb, seg_emb, pos_emb, vecs, wqkv, bqkv,
            wo.astype(bf16), w1.astype(bf16), b1,
            w2.astype(bf16), wp.astype(bf16), wc_pad, bc_pad]


def _resident_spec(shape):
    """Full-array block, same block every grid step -> weights stay resident in VMEM."""
    zeros = (0,) * len(shape)
    return pl.BlockSpec(shape, lambda b, tok, seg, vl, _z=zeros: _z)


def bert_classifier_forward(token_ids, valid_length, segment_ids, packed):
    tok = token_ids.astype(jnp.int32)
    seg = segment_ids.astype(jnp.int32)
    vlen = valid_length.reshape(B).astype(jnp.int32)

    grid_spec = pltpu.PrefetchScalarGridSpec(
        num_scalar_prefetch=3,                      # token_ids, segment_ids, valid_length -> SMEM
        grid=(B,),                                  # one batch element per grid step
        in_specs=[_resident_spec(p.shape) for p in packed],
        out_specs=pl.BlockSpec((1, OUT_SUB, C_PAD), lambda b, tok, seg, vl: (b, 0, 0)),
        scratch_shapes=[pltpu.VMEM((S, H), jnp.float32)],
    )
    out = pl.pallas_call(
        bert_classifier_kernel,
        out_shape=jax.ShapeDtypeStruct((B, OUT_SUB, C_PAD), jnp.float32),
        grid_spec=grid_spec,
        compiler_params=pltpu.CompilerParams(dimension_semantics=("parallel",)),
    )(tok, seg, vlen, *packed)
    return out[:, 0, :C]                            # (B, C) logits


if __name__ == "__main__":
    key = jax.random.PRNGKey(0)
    k_tok, k_seg, k_len, k_par = jax.random.split(key, 4)
    token_ids = jax.random.randint(k_tok, (B, S), 0, V, dtype=jnp.int32)
    segment_ids = jax.random.randint(k_seg, (B, S), 0, 2, dtype=jnp.int32)
    valid_length = jax.random.randint(k_len, (B,), 1, S + 1, dtype=jnp.int32)
    packed = pack_params(init_params(k_par))

    logits = bert_classifier_forward(token_ids, valid_length, segment_ids, packed)
    jax.block_until_ready(logits)
    assert logits.shape == (B, C) and logits.dtype == jnp.float32
    print("KERNEL_OK")
</pallas_src>

<mosaic_0001>
module attributes {stable_mosaic.version = 11 : i64} {
  func.func @bert_classifier_kernel(%arg0: i32, %arg1: memref<2x8xi32, #tpu.memory_space<smem>>, %arg2: memref<2x8xi32, #tpu.memory_space<smem>>, %arg3: memref<2xi32, #tpu.memory_space<smem>>, %arg4: memref<64x32xf32, #tpu.memory_space<vmem>>, %arg5: memref<2x32xf32, #tpu.memory_space<vmem>>, %arg6: memref<8x32xf32, #tpu.memory_space<vmem>>, %arg7: memref<9x32xf32, #tpu.memory_space<vmem>>, %arg8: memref<32x96xbf16, #tpu.memory_space<vmem>>, %arg9: memref<1x96xf32, #tpu.memory_space<vmem>>, %arg10: memref<32x32xbf16, #tpu.memory_space<vmem>>, %arg11: memref<32x128xbf16, #tpu.memory_space<vmem>>, %arg12: memref<1x128xf32, #tpu.memory_space<vmem>>, %arg13: memref<128x32xbf16, #tpu.memory_space<vmem>>, %arg14: memref<32x32xbf16, #tpu.memory_space<vmem>>, %arg15: memref<32x128xbf16, #tpu.memory_space<vmem>>, %arg16: memref<1x128xf32, #tpu.memory_space<vmem>>, %arg17: memref<1x8x128xf32, #tpu.memory_space<vmem>>, %arg18: memref<8x32xf32, #tpu.memory_space<vmem>>) attributes {dimension_semantics = [#tpu.dimension_semantics<parallel>], iteration_bounds = array<i64: 2>, scalar_prefetch = 3 : i64, scratch_operands = 1 : i64, tpu.core_type = #tpu.core_type<tc>, window_params = [{pipeline_mode = #tpu.pipeline_mode<synchronous>, transform_indices = @transform_0, window_bounds = array<i64: 64, 32>}, {pipeline_mode = #tpu.pipeline_mode<synchronous>, transform_indices = @transform_1, window_bounds = array<i64: 2, 32>}, {pipeline_mode = #tpu.pipeline_mode<synchronous>, transform_indices = @transform_2, window_bounds = array<i64: 8, 32>}, {pipeline_mode = #tpu.pipeline_mode<synchronous>, transform_indices = @transform_3, window_bounds = array<i64: 9, 32>}, {pipeline_mode = #tpu.pipeline_mode<synchronous>, transform_indices = @transform_4, window_bounds = array<i64: 32, 96>}, {pipeline_mode = #tpu.pipeline_mode<synchronous>, transform_indices = @transform_5, window_bounds = array<i64: 1, 96>}, {pipeline_mode = #tpu.pipeline_mode<synchronous>, transform_indices = @transform_6, window_bounds = array<i64: 32, 32>}, {pipeline_mode = #tpu.pipeline_mode<synchronous>, transform_indices = @transform_7, window_bounds = array<i64: 32, 128>}, {pipeline_mode = #tpu.pipeline_mode<synchronous>, transform_indices = @transform_8, window_bounds = array<i64: 1, 128>}, {pipeline_mode = #tpu.pipeline_mode<synchronous>, transform_indices = @transform_9, window_bounds = array<i64: 128, 32>}, {pipeline_mode = #tpu.pipeline_mode<synchronous>, transform_indices = @transform_10, window_bounds = array<i64: 32, 32>}, {pipeline_mode = #tpu.pipeline_mode<synchronous>, transform_indices = @transform_11, window_bounds = array<i64: 32, 128>}, {pipeline_mode = #tpu.pipeline_mode<synchronous>, transform_indices = @transform_12, window_bounds = array<i64: 1, 128>}, {transform_indices = @transform_13, window_bounds = array<i64: 1, 8, 128>}]} {
    %0 = arith.index_cast %arg0 : i32 to index
    %c0 = arith.constant 0 : index
    %1 = memref.load %arg1[%0, %c0] : memref<2x8xi32, #tpu.memory_space<smem>>
    %2 = arith.index_cast %arg0 : i32 to index
    %c0_0 = arith.constant 0 : index
    %3 = memref.load %arg2[%2, %c0_0] : memref<2x8xi32, #tpu.memory_space<smem>>
    %4 = arith.index_cast %1 : i32 to index
    %c0_1 = arith.constant 0 : index
    %5 = vector.load %arg4[%4, %c0_1] : memref<64x32xf32, #tpu.memory_space<vmem>>, vector<1x32xf32>
    %6 = arith.index_cast %3 : i32 to index
    %c0_2 = arith.constant 0 : index
    %7 = vector.load %arg5[%6, %c0_2] : memref<2x32xf32, #tpu.memory_space<vmem>>, vector<1x32xf32>
    %8 = arith.addf %5, %7 : vector<1x32xf32>
    %c0_3 = arith.constant 0 : index
    %c0_4 = arith.constant 0 : index
    %9 = vector.load %arg18[%c0_3, %c0_4] : memref<8x32xf32, #tpu.memory_space<vmem>>, vector<1x32xf32>
    tpu.vector_store %arg18[%c0_3, %c0_4], %8 {strides = array<i32>} : memref<8x32xf32, #tpu.memory_space<vmem>>, vector<1x32xf32>,
    %10 = arith.index_cast %arg0 : i32 to index
    %c1 = arith.constant 1 : index
    %11 = memref.load %arg1[%10, %c1] : memref<2x8xi32, #tpu.memory_space<smem>>
    %12 = arith.index_cast %arg0 : i32 to index
    %c1_5 = arith.constant 1 : index
    %13 = memref.load %arg2[%12, %c1_5] : memref<2x8xi32, #tpu.memory_space<smem>>
    %14 = arith.index_cast %11 : i32 to index
    %c0_6 = arith.constant 0 : index
    %15 = vector.load %arg4[%14, %c0_6] : memref<64x32xf32, #tpu.memory_space<vmem>>, vector<1x32xf32>
    %16 = arith.index_cast %13 : i32 to index
    %c0_7 = arith.constant 0 : index
    %17 = vector.load %arg5[%16, %c0_7] : memref<2x32xf32, #tpu.memory_space<vmem>>, vector<1x32xf32>
    %18 = arith.addf %15, %17 : vector<1x32xf32>
    %c1_8 = arith.constant 1 : index
    %c0_9 = arith.constant 0 : index
    %19 = vector.load %arg18[%c1_8, %c0_9] : memref<8x32xf32, #tpu.memory_space<vmem>>, vector<1x32xf32>
    tpu.vector_store %arg18[%c1_8, %c0_9], %18 {strides = array<i32>} : memref<8x32xf32, #tpu.memory_space<vmem>>, vector<1x32xf32>,
    %20 = arith.index_cast %arg0 : i32 to index
    %c2 = arith.constant 2 : index
    %21 = memref.load %arg1[%20, %c2] : memref<2x8xi32, #tpu.memory_space<smem>>
    %22 = arith.index_cast %arg0 : i32 to index
    %c2_10 = arith.constant 2 : index
    %23 = memref.load %arg2[%22, %c2_10] : memref<2x8xi32, #tpu.memory_space<smem>>
    %24 = arith.index_cast %21 : i32 to index
    %c0_11 = arith.constant 0 : index
    %25 = vector.load %arg4[%24, %c0_11] : memref<64x32xf32, #tpu.memory_space<vmem>>, vector<1x32xf32>
    %26 = arith.index_cast %23 : i32 to index
    %c0_12 = arith.constant 0 : index
    %27 = vector.load %arg5[%26, %c0_12] : memref<2x32xf32, #tpu.memory_space<vmem>>, vector<1x32xf32>
    %28 = arith.addf %25, %27 : vector<1x32xf32>
    %c2_13 = arith.constant 2 : index
    %c0_14 = arith.constant 0 : index
    %29 = vector.load %arg18[%c2_13, %c0_14] : memref<8x32xf32, #tpu.memory_space<vmem>>, vector<1x32xf32>
    tpu.vector_store %arg18[%c2_13, %c0_14], %28 {strides = array<i32>} : memref<8x32xf32, #tpu.memory_space<vmem>>, vector<1x32xf32>,
    %30 = arith.index_cast %arg0 : i32 to index
    %c3 = arith.constant 3 : index
    %31 = memref.load %arg1[%30, %c3] : memref<2x8xi32, #tpu.memory_space<smem>>
    %32 = arith.index_cast %arg0 : i32 to index
    %c3_15 = arith.constant 3 : index
    %33 = memref.load %arg2[%32, %c3_15] : memref<2x8xi32, #tpu.memory_space<smem>>
    %34 = arith.index_cast %31 : i32 to index
    %c0_16 = arith.constant 0 : index
    %35 = vector.load %arg4[%34, %c0_16] : memref<64x32xf32, #tpu.memory_space<vmem>>, vector<1x32xf32>
    %36 = arith.index_cast %33 : i32 to index
    %c0_17 = arith.constant 0 : index
    %37 = vector.load %arg5[%36, %c0_17] : memref<2x32xf32, #tpu.memory_space<vmem>>, vector<1x32xf32>
    %38 = arith.addf %35, %37 : vector<1x32xf32>
    %c3_18 = arith.constant 3 : index
    %c0_19 = arith.constant 0 : index
    %39 = vector.load %arg18[%c3_18, %c0_19] : memref<8x32xf32, #tpu.memory_space<vmem>>, vector<1x32xf32>
    tpu.vector_store %arg18[%c3_18, %c0_19], %38 {strides = array<i32>} : memref<8x32xf32, #tpu.memory_space<vmem>>, vector<1x32xf32>,
    %40 = arith.index_cast %arg0 : i32 to index
    %c4 = arith.constant 4 : index
    %41 = memref.load %arg1[%40, %c4] : memref<2x8xi32, #tpu.memory_space<smem>>
    %42 = arith.index_cast %arg0 : i32 to index
    %c4_20 = arith.constant 4 : index
    %43 = memref.load %arg2[%42, %c4_20] : memref<2x8xi32, #tpu.memory_space<smem>>
    %44 = arith.index_cast %41 : i32 to index
    %c0_21 = arith.constant 0 : index
    %45 = vector.load %arg4[%44, %c0_21] : memref<64x32xf32, #tpu.memory_space<vmem>>, vector<1x32xf32>
    %46 = arith.index_cast %43 : i32 to index
    %c0_22 = arith.constant 0 : index
    %47 = vector.load %arg5[%46, %c0_22] : memref<2x32xf32, #tpu.memory_space<vmem>>, vector<1x32xf32>
    %48 = arith.addf %45, %47 : vector<1x32xf32>
    %c4_23 = arith.constant 4 : index
    %c0_24 = arith.constant 0 : index
    %49 = vector.load %arg18[%c4_23, %c0_24] : memref<8x32xf32, #tpu.memory_space<vmem>>, vector<1x32xf32>
    tpu.vector_store %arg18[%c4_23, %c0_24], %48 {strides = array<i32>} : memref<8x32xf32, #tpu.memory_space<vmem>>, vector<1x32xf32>,
    %50 = arith.index_cast %arg0 : i32 to index
    %c5 = arith.constant 5 : index
    %51 = memref.load %arg1[%50, %c5] : memref<2x8xi32, #tpu.memory_space<smem>>
    %52 = arith.index_cast %arg0 : i32 to index
    %c5_25 = arith.constant 5 : index
    %53 = memref.load %arg2[%52, %c5_25] : memref<2x8xi32, #tpu.memory_space<smem>>
    %54 = arith.index_cast %51 : i32 to index
    %c0_26 = arith.constant 0 : index
    %55 = vector.load %arg4[%54, %c0_26] : memref<64x32xf32, #tpu.memory_space<vmem>>, vector<1x32xf32>
    %56 = arith.index_cast %53 : i32 to index
    %c0_27 = arith.constant 0 : index
    %57 = vector.load %arg5[%56, %c0_27] : memref<2x32xf32, #tpu.memory_space<vmem>>, vector<1x32xf32>
    %58 = arith.addf %55, %57 : vector<1x32xf32>
    %c5_28 = arith.constant 5 : index
    %c0_29 = arith.constant 0 : index
    %59 = vector.load %arg18[%c5_28, %c0_29] : memref<8x32xf32, #tpu.memory_space<vmem>>, vector<1x32xf32>
    tpu.vector_store %arg18[%c5_28, %c0_29], %58 {strides = array<i32>} : memref<8x32xf32, #tpu.memory_space<vmem>>, vector<1x32xf32>,
    %60 = arith.index_cast %arg0 : i32 to index
    %c6 = arith.constant 6 : index
    %61 = memref.load %arg1[%60, %c6] : memref<2x8xi32, #tpu.memory_space<smem>>
    %62 = arith.index_cast %arg0 : i32 to index
    %c6_30 = arith.constant 6 : index
    %63 = memref.load %arg2[%62, %c6_30] : memref<2x8xi32, #tpu.memory_space<smem>>
    %64 = arith.index_cast %61 : i32 to index
    %c0_31 = arith.constant 0 : index
    %65 = vector.load %arg4[%64, %c0_31] : memref<64x32xf32, #tpu.memory_space<vmem>>, vector<1x32xf32>
    %66 = arith.index_cast %63 : i32 to index
    %c0_32 = arith.constant 0 : index
    %67 = vector.load %arg5[%66, %c0_32] : memref<2x32xf32, #tpu.memory_space<vmem>>, vector<1x32xf32>
    %68 = arith.addf %65, %67 : vector<1x32xf32>
    %c6_33 = arith.constant 6 : index
    %c0_34 = arith.constant 0 : index
    %69 = vector.load %arg18[%c6_33, %c0_34] : memref<8x32xf32, #tpu.memory_space<vmem>>, vector<1x32xf32>
    tpu.vector_store %arg18[%c6_33, %c0_34], %68 {strides = array<i32>} : memref<8x32xf32, #tpu.memory_space<vmem>>, vector<1x32xf32>,
    %70 = arith.index_cast %arg0 : i32 to index
    %c7 = arith.constant 7 : index
    %71 = memref.load %arg1[%70, %c7] : memref<2x8xi32, #tpu.memory_space<smem>>
    %72 = arith.index_cast %arg0 : i32 to index
    %c7_35 = arith.constant 7 : index
    %73 = memref.load %arg2[%72, %c7_35] : memref<2x8xi32, #tpu.memory_space<smem>>
    %74 = arith.index_cast %71 : i32 to index
    %c0_36 = arith.constant 0 : index
    %75 = vector.load %arg4[%74, %c0_36] : memref<64x32xf32, #tpu.memory_space<vmem>>, vector<1x32xf32>
    %76 = arith.index_cast %73 : i32 to index
    %c0_37 = arith.constant 0 : index
    %77 = vector.load %arg5[%76, %c0_37] : memref<2x32xf32, #tpu.memory_space<vmem>>, vector<1x32xf32>
    %78 = arith.addf %75, %77 : vector<1x32xf32>
    %c7_38 = arith.constant 7 : index
    %c0_39 = arith.constant 0 : index
    %79 = vector.load %arg18[%c7_38, %c0_39] : memref<8x32xf32, #tpu.memory_space<vmem>>, vector<1x32xf32>
    tpu.vector_store %arg18[%c7_38, %c0_39], %78 {strides = array<i32>} : memref<8x32xf32, #tpu.memory_space<vmem>>, vector<1x32xf32>,
    %c0_40 = arith.constant 0 : index
    %c0_41 = arith.constant 0 : index
    %80 = vector.load %arg18[%c0_40, %c0_41] : memref<8x32xf32, #tpu.memory_space<vmem>>, vector<8x32xf32>
    %c0_42 = arith.constant 0 : index
    %c0_43 = arith.constant 0 : index
    %81 = vector.load %arg6[%c0_42, %c0_43] : memref<8x32xf32, #tpu.memory_space<vmem>>, vector<8x32xf32>
    %82 = arith.addf %80, %81 : vector<8x32xf32>
    %c0_44 = arith.constant 0 : index
    %c0_45 = arith.constant 0 : index
    %83 = vector.load %arg7[%c0_44, %c0_45] : memref<9x32xf32, #tpu.memory_space<vmem>>, vector<1x32xf32>
    %c1_46 = arith.constant 1 : index
    %c0_47 = arith.constant 0 : index
    %84 = vector.load %arg7[%c1_46, %c0_47] : memref<9x32xf32, #tpu.memory_space<vmem>>, vector<1x32xf32>
    %cst = arith.constant dense<0.000000e+00> : vector<8xf32>
    %85 = vector.multi_reduction <add>, %82, %cst [1] : vector<8x32xf32> to vector<8xf32>
    %86 = vector.shape_cast %85 : vector<8xf32> to vector<8x1xf32>
    %cst_48 = arith.constant 3.200000e+01 : f32
    %87 = vector.broadcast %cst_48 : f32 to vector<8x1xf32>
    %88 = arith.divf %86, %87 : vector<8x1xf32>
    %89 = vector.broadcast %88 : vector<8x1xf32> to vector<8x32xf32>
    %90 = arith.subf %82, %89 : vector<8x32xf32>
    %91 = arith.mulf %90, %90 : vector<8x32xf32>
    %cst_49 = arith.constant dense<0.000000e+00> : vector<8xf32>
    %92 = vector.multi_reduction <add>, %91, %cst_49 [1] : vector<8x32xf32> to vector<8xf32>
    %93 = vector.shape_cast %92 : vector<8xf32> to vector<8x1xf32>
    %cst_50 = arith.constant 3.200000e+01 : f32
    %94 = vector.broadcast %cst_50 : f32 to vector<8x1xf32>
    %95 = arith.divf %93, %94 : vector<8x1xf32>
    %96 = vector.broadcast %88 : vector<8x1xf32> to vector<8x32xf32>
    %97 = arith.subf %82, %96 : vector<8x32xf32>
    %cst_51 = arith.constant 9.99999996E-13 : f32
    %98 = vector.broadcast %cst_51 : f32 to vector<8x1xf32>
    %99 = arith.addf %95, %98 : vector<8x1xf32>
    %100 = math.rsqrt %99 : vector<8x1xf32>
    %101 = vector.broadcast %100 : vector<8x1xf32> to vector<8x32xf32>
    %102 = arith.mulf %97, %101 : vector<8x32xf32>
    %103 = vector.broadcast %83 : vector<1x32xf32> to vector<8x32xf32>
    %104 = arith.mulf %102, %103 : vector<8x32xf32>
    %105 = vector.broadcast %84 : vector<1x32xf32> to vector<8x32xf32>
    %106 = arith.addf %104, %105 : vector<8x32xf32>
    %107 = tpu.iota {dimensions = array<i32: 1>} : vector<1x8xi32>
    %108 = arith.index_cast %arg0 : i32 to index
    %109 = memref.load %arg3[%108] : memref<2xi32, #tpu.memory_space<smem>>
    %110 = vector.broadcast %109 : i32 to vector<1x8xi32>
    %111 = arith.cmpi slt, %107, %110 : vector<1x8xi32>
    %cst_52 = arith.constant 0.000000e+00 : f32
    %cst_53 = arith.constant -1.000000e+09 : f32
    %112 = vector.broadcast %cst_52 : f32 to vector<1x8xf32>
    %113 = vector.broadcast %cst_53 : f32 to vector<1x8xf32>
    %114 = arith.select %111, %112, %113 : vector<1x8xi1>, vector<1x8xf32>
    %115 = arith.truncf %106 : vector<8x32xf32> to vector<8x32xbf16>
    %c0_54 = arith.constant 0 : index
    %c0_55 = arith.constant 0 : index
    %116 = vector.load %arg8[%c0_54, %c0_55] : memref<32x96xbf16, #tpu.memory_space<vmem>>, vector<32x96xbf16>
    %cst_56 = arith.constant dense<0.000000e+00> : vector<8x96xf32>
    %117 = tpu.matmul %115, %116, %cst_56 {dimension_numbers = #tpu.dot_dimension_numbers<[1], [0], [0], [1], [0, 0, 1, 1], [], []>} : vector<8x32xbf16>, vector<32x96xbf16>, vector<8x96xf32> -> vector<8x96xf32>
    %c0_57 = arith.constant 0 : index
    %c0_58 = arith.constant 0 : index
    %118 = vector.load %arg9[%c0_57, %c0_58] : memref<1x96xf32, #tpu.memory_space<vmem>>, vector<1x96xf32>
    %119 = vector.broadcast %118 : vector<1x96xf32> to vector<8x96xf32>
    %120 = arith.addf %117, %119 : vector<8x96xf32>
    %121 = vector.extract_strided_slice %120 {offsets = [0, 0], sizes = [8, 32], strides = [1, 1]} : vector<8x96xf32> to vector<8x32xf32>
    %122 = vector.shape_cast %121 : vector<8x32xf32> to vector<8x2x16xf32>
    %123 = tpu.transpose %122, [1, 0, 2] : vector<8x2x16xf32> -> vector<2x8x16xf32>
    %124 = vector.extract_strided_slice %120 {offsets = [0, 32], sizes = [8, 32], strides = [1, 1]} : vector<8x96xf32> to vector<8x32xf32>
    %125 = vector.shape_cast %124 : vector<8x32xf32> to vector<8x2x16xf32>
    %126 = tpu.transpose %125, [1, 0, 2] : vector<8x2x16xf32> -> vector<2x8x16xf32>
    %127 = vector.extract_strided_slice %120 {offsets = [0, 64], sizes = [8, 32], strides = [1, 1]} : vector<8x96xf32> to vector<8x32xf32>
    %128 = vector.shape_cast %127 : vector<8x32xf32> to vector<8x2x16xf32>
    %129 = tpu.transpose %128, [1, 0, 2] : vector<8x2x16xf32> -> vector<2x8x16xf32>
    %130 = arith.truncf %123 : vector<2x8x16xf32> to vector<2x8x16xbf16>
    %131 = arith.truncf %126 : vector<2x8x16xf32> to vector<2x8x16xbf16>
    "tpu.trace_start"() <{level = 10 : i32, message = "hqd,hkd->hqk"}> : () -> ()
    %cst_59 = arith.constant dense<0.000000e+00> : vector<2x8x8xf32>
    %132 = tpu.matmul %130, %131, %cst_59 {dimension_numbers = #tpu.dot_dimension_numbers<[2], [2], [1], [1], [0, 0, 0, 1, 1, 1], [0], [0]>} : vector<2x8x16xbf16>, vector<2x8x16xbf16>, vector<2x8x8xf32> -> vector<2x8x8xf32>
    "tpu.trace_stop"() : () -> ()
    %cst_60 = arith.constant 2.500000e-01 : f32
    %133 = vector.broadcast %cst_60 : f32 to vector<2x8x8xf32>
    %134 = arith.mulf %132, %133 : vector<2x8x8xf32>
    %135 = vector.shape_cast %114 : vector<1x8xf32> to vector<1x1x8xf32>
    %136 = vector.broadcast %135 : vector<1x1x8xf32> to vector<2x8x8xf32>
    %137 = arith.addf %134, %136 : vector<2x8x8xf32>
    %cst_61 = arith.constant dense<0xFF800000> : vector<2x8xf32>
    %138 = vector.multi_reduction <maximumf>, %137, %cst_61 [2] : vector<2x8x8xf32> to vector<2x8xf32>
    %139 = vector.shape_cast %138 : vector<2x8xf32> to vector<2x8x1xf32>
    %140 = vector.broadcast %139 : vector<2x8x1xf32> to vector<2x8x8xf32>
    %141 = arith.subf %137, %140 : vector<2x8x8xf32>
    %142 = math.exp %141 : vector<2x8x8xf32>
    %cst_62 = arith.constant dense<0.000000e+00> : vector<2x8xf32>
    %143 = vector.multi_reduction <add>, %142, %cst_62 [2] : vector<2x8x8xf32> to vector<2x8xf32>
    %144 = vector.shape_cast %143 : vector<2x8xf32> to vector<2x8x1xf32>
    %145 = tpu.reciprocal %144 {approx = true} : vector<2x8x1xf32> -> vector<2x8x1xf32>
    %146 = vector.broadcast %145 : vector<2x8x1xf32> to vector<2x8x8xf32>
    %147 = arith.mulf %142, %146 : vector<2x8x8xf32>
    %148 = arith.truncf %147 : vector<2x8x8xf32> to vector<2x8x8xbf16>
    %149 = arith.truncf %129 : vector<2x8x16xf32> to vector<2x8x16xbf16>
    "tpu.trace_start"() <{level = 10 : i32, message = "hqk,hkd->hqd"}> : () -> ()
    %cst_63 = arith.constant dense<0.000000e+00> : vector<2x8x16xf32>
    %150 = tpu.matmul %148, %149, %cst_63 {dimension_numbers = #tpu.dot_dimension_numbers<[2], [1], [1], [2], [0, 0, 0, 1, 1, 2], [0], [0]>} : vector<2x8x8xbf16>, vector<2x8x16xbf16>, vector<2x8x16xf32> -> vector<2x8x16xf32>
    "tpu.trace_stop"() : () -> ()
    %151 = tpu.transpose %150, [1, 0, 2] : vector<2x8x16xf32> -> vector<8x2x16xf32>
    %152 = vector.shape_cast %151 : vector<8x2x16xf32> to vector<8x32xf32>
    %153 = arith.truncf %152 : vector<8x32xf32> to vector<8x32xbf16>
    %c0_64 = arith.constant 0 : index
    %c0_65 = arith.constant 0 : index
    %154 = vector.load %arg10[%c0_64, %c0_65] : memref<32x32xbf16, #tpu.memory_space<vmem>>, vector<32x32xbf16>
    %cst_66 = arith.constant dense<0.000000e+00> : vector<8x32xf32>
    %155 = tpu.matmul %153, %154, %cst_66 {dimension_numbers = #tpu.dot_dimension_numbers<[1], [0], [0], [1], [0, 0, 1, 1], [], []>} : vector<8x32xbf16>, vector<32x32xbf16>, vector<8x32xf32> -> vector<8x32xf32>
    %156 = arith.addf %106, %155 : vector<8x32xf32>
    %c2_67 = arith.constant 2 : index
    %c0_68 = arith.constant 0 : index
    %157 = vector.load %arg7[%c2_67, %c0_68] : memref<9x32xf32, #tpu.memory_space<vmem>>, vector<1x32xf32>
    %158 = vector.broadcast %157 : vector<1x32xf32> to vector<8x32xf32>
    %159 = arith.addf %156, %158 : vector<8x32xf32>
    %c3_69 = arith.constant 3 : index
    %c0_70 = arith.constant 0 : index
    %160 = vector.load %arg7[%c3_69, %c0_70] : memref<9x32xf32, #tpu.memory_space<vmem>>, vector<1x32xf32>
    %c4_71 = arith.constant 4 : index
    %c0_72 = arith.constant 0 : index
    %161 = vector.load %arg7[%c4_71, %c0_72] : memref<9x32xf32, #tpu.memory_space<vmem>>, vector<1x32xf32>
    %cst_73 = arith.constant dense<0.000000e+00> : vector<8xf32>
    %162 = vector.multi_reduction <add>, %159, %cst_73 [1] : vector<8x32xf32> to vector<8xf32>
    %163 = vector.shape_cast %162 : vector<8xf32> to vector<8x1xf32>
    %cst_74 = arith.constant 3.200000e+01 : f32
    %164 = vector.broadcast %cst_74 : f32 to vector<8x1xf32>
    %165 = arith.divf %163, %164 : vector<8x1xf32>
    %166 = vector.broadcast %165 : vector<8x1xf32> to vector<8x32xf32>
    %167 = arith.subf %159, %166 : vector<8x32xf32>
    %168 = arith.mulf %167, %167 : vector<8x32xf32>
    %cst_75 = arith.constant dense<0.000000e+00> : vector<8xf32>
    %169 = vector.multi_reduction <add>, %168, %cst_75 [1] : vector<8x32xf32> to vector<8xf32>
    %170 = vector.shape_cast %169 : vector<8xf32> to vector<8x1xf32>
    %cst_76 = arith.constant 3.200000e+01 : f32
    %171 = vector.broadcast %cst_76 : f32 to vector<8x1xf32>
    %172 = arith.divf %170, %171 : vector<8x1xf32>
    %173 = vector.broadcast %165 : vector<8x1xf32> to vector<8x32xf32>
    %174 = arith.subf %159, %173 : vector<8x32xf32>
    %cst_77 = arith.constant 9.99999996E-13 : f32
    %175 = vector.broadcast %cst_77 : f32 to vector<8x1xf32>
    %176 = arith.addf %172, %175 : vector<8x1xf32>
    %177 = math.rsqrt %176 : vector<8x1xf32>
    %178 = vector.broadcast %177 : vector<8x1xf32> to vector<8x32xf32>
    %179 = arith.mulf %174, %178 : vector<8x32xf32>
    %180 = vector.broadcast %160 : vector<1x32xf32> to vector<8x32xf32>
    %181 = arith.mulf %179, %180 : vector<8x32xf32>
    %182 = vector.broadcast %161 : vector<1x32xf32> to vector<8x32xf32>
    %183 = arith.addf %181, %182 : vector<8x32xf32>
    %184 = arith.truncf %183 : vector<8x32xf32> to vector<8x32xbf16>
    %c0_78 = arith.constant 0 : index
    %c0_79 = arith.constant 0 : index
    %185 = vector.load %arg11[%c0_78, %c0_79] : memref<32x128xbf16, #tpu.memory_space<vmem>>, vector<32x128xbf16>
    %cst_80 = arith.constant dense<0.000000e+00> : vector<8x128xf32>
    %186 = tpu.matmul %184, %185, %cst_80 {dimension_numbers = #tpu.dot_dimension_numbers<[1], [0], [0], [1], [0, 0, 1, 1], [], []>} : vector<8x32xbf16>, vector<32x128xbf16>, vector<8x128xf32> -> vector<8x128xf32>
    %c0_81 = arith.constant 0 : index
    %c0_82 = arith.constant 0 : index
    %187 = vector.load %arg12[%c0_81, %c0_82] : memref<1x128xf32, #tpu.memory_space<vmem>>, vector<1x128xf32>
    %188 = vector.broadcast %187 : vector<1x128xf32> to vector<8x128xf32>
    %189 = arith.addf %186, %188 : vector<8x128xf32>
    %190 = arith.mulf %189, %189 : vector<8x128xf32>
    %191 = arith.mulf %189, %190 : vector<8x128xf32>
    %cst_83 = arith.constant 4.471500e-02 : f32
    %192 = vector.broadcast %cst_83 : f32 to vector<8x128xf32>
    %193 = arith.mulf %192, %191 : vector<8x128xf32>
    %194 = arith.addf %189, %193 : vector<8x128xf32>
    %cst_84 = arith.constant 0.797884583 : f32
    %195 = vector.broadcast %cst_84 : f32 to vector<8x128xf32>
    %196 = arith.mulf %195, %194 : vector<8x128xf32>
    %197 = math.tanh %196 : vector<8x128xf32>
    %cst_85 = arith.constant 1.000000e+00 : f32
    %198 = vector.broadcast %cst_85 : f32 to vector<8x128xf32>
    %199 = arith.addf %198, %197 : vector<8x128xf32>
    %cst_86 = arith.constant 5.000000e-01 : f32
    %200 = vector.broadcast %cst_86 : f32 to vector<8x128xf32>
    %201 = arith.mulf %200, %199 : vector<8x128xf32>
    %202 = arith.mulf %189, %201 : vector<8x128xf32>
    %203 = arith.truncf %202 : vector<8x128xf32> to vector<8x128xbf16>
    %c0_87 = arith.constant 0 : index
    %c0_88 = arith.constant 0 : index
    %204 = vector.load %arg13[%c0_87, %c0_88] : memref<128x32xbf16, #tpu.memory_space<vmem>>, vector<128x32xbf16>
    %cst_89 = arith.constant dense<0.000000e+00> : vector<8x32xf32>
    %205 = tpu.matmul %203, %204, %cst_89 {dimension_numbers = #tpu.dot_dimension_numbers<[1], [0], [0], [1], [0, 0, 1, 1], [], []>} : vector<8x128xbf16>, vector<128x32xbf16>, vector<8x32xf32> -> vector<8x32xf32>
    %206 = arith.addf %183, %205 : vector<8x32xf32>
    %c5_90 = arith.constant 5 : index
    %c0_91 = arith.constant 0 : index
    %207 = vector.load %arg7[%c5_90, %c0_91] : memref<9x32xf32, #tpu.memory_space<vmem>>, vector<1x32xf32>
    %208 = vector.broadcast %207 : vector<1x32xf32> to vector<8x32xf32>
    %209 = arith.addf %206, %208 : vector<8x32xf32>
    %c6_92 = arith.constant 6 : index
    %c0_93 = arith.constant 0 : index
    %210 = vector.load %arg7[%c6_92, %c0_93] : memref<9x32xf32, #tpu.memory_space<vmem>>, vector<1x32xf32>
    %c7_94 = arith.constant 7 : index
    %c0_95 = arith.constant 0 : index
    %211 = vector.load %arg7[%c7_94, %c0_95] : memref<9x32xf32, #tpu.memory_space<vmem>>, vector<1x32xf32>
    %cst_96 = arith.constant dense<0.000000e+00> : vector<8xf32>
    %212 = vector.multi_reduction <add>, %209, %cst_96 [1] : vector<8x32xf32> to vector<8xf32>
    %213 = vector.shape_cast %212 : vector<8xf32> to vector<8x1xf32>
    %cst_97 = arith.constant 3.200000e+01 : f32
    %214 = vector.broadcast %cst_97 : f32 to vector<8x1xf32>
    %215 = arith.divf %213, %214 : vector<8x1xf32>
    %216 = vector.broadcast %215 : vector<8x1xf32> to vector<8x32xf32>
    %217 = arith.subf %209, %216 : vector<8x32xf32>
    %218 = arith.mulf %217, %217 : vector<8x32xf32>
    %cst_98 = arith.constant dense<0.000000e+00> : vector<8xf32>
    %219 = vector.multi_reduction <add>, %218, %cst_98 [1] : vector<8x32xf32> to vector<8xf32>
    %220 = vector.shape_cast %219 : vector<8xf32> to vector<8x1xf32>
    %cst_99 = arith.constant 3.200000e+01 : f32
    %221 = vector.broadcast %cst_99 : f32 to vector<8x1xf32>
    %222 = arith.divf %220, %221 : vector<8x1xf32>
    %223 = vector.broadcast %215 : vector<8x1xf32> to vector<8x32xf32>
    %224 = arith.subf %209, %223 : vector<8x32xf32>
    %cst_100 = arith.constant 9.99999996E-13 : f32
    %225 = vector.broadcast %cst_100 : f32 to vector<8x1xf32>
    %226 = arith.addf %222, %225 : vector<8x1xf32>
    %227 = math.rsqrt %226 : vector<8x1xf32>
    %228 = vector.broadcast %227 : vector<8x1xf32> to vector<8x32xf32>
    %229 = arith.mulf %224, %228 : vector<8x32xf32>
    %230 = vector.broadcast %210 : vector<1x32xf32> to vector<8x32xf32>
    %231 = arith.mulf %229, %230 : vector<8x32xf32>
    %232 = vector.broadcast %211 : vector<1x32xf32> to vector<8x32xf32>
    %233 = arith.addf %231, %232 : vector<8x32xf32>
    %234 = vector.extract_strided_slice %233 {offsets = [0, 0], sizes = [1, 32], strides = [1, 1]} : vector<8x32xf32> to vector<1x32xf32>
    %235 = arith.truncf %234 : vector<1x32xf32> to vector<1x32xbf16>
    %c0_101 = arith.constant 0 : index
    %c0_102 = arith.constant 0 : index
    %236 = vector.load %arg14[%c0_101, %c0_102] : memref<32x32xbf16, #tpu.memory_space<vmem>>, vector<32x32xbf16>
    %cst_103 = arith.constant dense<0.000000e+00> : vector<1x32xf32>
    %237 = tpu.matmul %235, %236, %cst_103 {dimension_numbers = #tpu.dot_dimension_numbers<[1], [0], [0], [1], [0, 0, 1, 1], [], []>} : vector<1x32xbf16>, vector<32x32xbf16>, vector<1x32xf32> -> vector<1x32xf32>
    %c8 = arith.constant 8 : index
    %c0_104 = arith.constant 0 : index
    %238 = vector.load %arg7[%c8, %c0_104] : memref<9x32xf32, #tpu.memory_space<vmem>>, vector<1x32xf32>
    %239 = arith.addf %237, %238 : vector<1x32xf32>
    %240 = math.tanh %239 : vector<1x32xf32>
    %241 = arith.truncf %240 : vector<1x32xf32> to vector<1x32xbf16>
    %c0_105 = arith.constant 0 : index
    %c0_106 = arith.constant 0 : index
    %242 = vector.load %arg15[%c0_105, %c0_106] : memref<32x128xbf16, #tpu.memory_space<vmem>>, vector<32x128xbf16>
    %cst_107 = arith.constant dense<0.000000e+00> : vector<1x128xf32>
    %243 = tpu.matmul %241, %242, %cst_107 {dimension_numbers = #tpu.dot_dimension_numbers<[1], [0], [0], [1], [0, 0, 1, 1], [], []>} : vector<1x32xbf16>, vector<32x128xbf16>, vector<1x128xf32> -> vector<1x128xf32>
    %c0_108 = arith.constant 0 : index
    %c0_109 = arith.constant 0 : index
    %244 = vector.load %arg16[%c0_108, %c0_109] : memref<1x128xf32, #tpu.memory_space<vmem>>, vector<1x128xf32>
    %245 = arith.addf %243, %244 : vector<1x128xf32>
    %246 = vector.shape_cast %245 : vector<1x128xf32> to vector<1x128xf32>
    %247 = vector.broadcast %246 : vector<1x128xf32> to vector<8x128xf32>
    %248 = vector.shape_cast %247 : vector<8x128xf32> to vector<1x8x128xf32>
    %c0_110 = arith.constant 0 : index
    %c0_111 = arith.constant 0 : index
    %c0_112 = arith.constant 0 : index
    %249 = vector.load %arg17[%c0_110, %c0_111, %c0_112] : memref<1x8x128xf32, #tpu.memory_space<vmem>>, vector<1x8x128xf32>
    tpu.vector_store %arg17[%c0_110, %c0_111, %c0_112], %248 {strides = array<i32>} : memref<1x8x128xf32, #tpu.memory_space<vmem>>, vector<1x8x128xf32>,
    return
  }
  func.func @transform_0(%arg0: i32, %arg1: memref<2x8xi32, #tpu.memory_space<smem>>, %arg2: memref<2x8xi32, #tpu.memory_space<smem>>, %arg3: memref<2xi32, #tpu.memory_space<smem>>) -> (i32, i32) {
    %c0_i32 = arith.constant 0 : i32
    %c0_i32_0 = arith.constant 0 : i32
    %c0_i32_1 = arith.constant 0 : i32
    return %c0_i32, %c0_i32_0 : i32, i32
  }
  func.func @transform_1(%arg0: i32, %arg1: memref<2x8xi32, #tpu.memory_space<smem>>, %arg2: memref<2x8xi32, #tpu.memory_space<smem>>, %arg3: memref<2xi32, #tpu.memory_space<smem>>) -> (i32, i32) {
    %c0_i32 = arith.constant 0 : i32
    %c0_i32_0 = arith.constant 0 : i32
    %c0_i32_1 = arith.constant 0 : i32
    return %c0_i32, %c0_i32_0 : i32, i32
  }
  func.func @transform_2(%arg0: i32, %arg1: memref<2x8xi32, #tpu.memory_space<smem>>, %arg2: memref<2x8xi32, #tpu.memory_space<smem>>, %arg3: memref<2xi32, #tpu.memory_space<smem>>) -> (i32, i32) {
    %c0_i32 = arith.constant 0 : i32
    %c0_i32_0 = arith.constant 0 : i32
    %c0_i32_1 = arith.constant 0 : i32
    return %c0_i32, %c0_i32_0 : i32, i32
  }
  func.func @transform_3(%arg0: i32, %arg1: memref<2x8xi32, #tpu.memory_space<smem>>, %arg2: memref<2x8xi32, #tpu.memory_space<smem>>, %arg3: memref<2xi32, #tpu.memory_space<smem>>) -> (i32, i32) {
    %c0_i32 = arith.constant 0 : i32
    %c0_i32_0 = arith.constant 0 : i32
    %c0_i32_1 = arith.constant 0 : i32
    return %c0_i32, %c0_i32_0 : i32, i32
  }
  func.func @transform_4(%arg0: i32, %arg1: memref<2x8xi32, #tpu.memory_space<smem>>, %arg2: memref<2x8xi32, #tpu.memory_space<smem>>, %arg3: memref<2xi32, #tpu.memory_space<smem>>) -> (i32, i32) {
    %c0_i32 = arith.constant 0 : i32
    %c0_i32_0 = arith.constant 0 : i32
    %c0_i32_1 = arith.constant 0 : i32
    return %c0_i32, %c0_i32_0 : i32, i32
  }
  func.func @transform_5(%arg0: i32, %arg1: memref<2x8xi32, #tpu.memory_space<smem>>, %arg2: memref<2x8xi32, #tpu.memory_space<smem>>, %arg3: memref<2xi32, #tpu.memory_space<smem>>) -> (i32, i32) {
    %c0_i32 = arith.constant 0 : i32
    %c0_i32_0 = arith.constant 0 : i32
    %c0_i32_1 = arith.constant 0 : i32
    return %c0_i32, %c0_i32_0 : i32, i32
  }
  func.func @transform_6(%arg0: i32, %arg1: memref<2x8xi32, #tpu.memory_space<smem>>, %arg2: memref<2x8xi32, #tpu.memory_space<smem>>, %arg3: memref<2xi32, #tpu.memory_space<smem>>) -> (i32, i32) {
    %c0_i32 = arith.constant 0 : i32
    %c0_i32_0 = arith.constant 0 : i32
    %c0_i32_1 = arith.constant 0 : i32
    return %c0_i32, %c0_i32_0 : i32, i32
  }
  func.func @transform_7(%arg0: i32, %arg1: memref<2x8xi32, #tpu.memory_space<smem>>, %arg2: memref<2x8xi32, #tpu.memory_space<smem>>, %arg3: memref<2xi32, #tpu.memory_space<smem>>) -> (i32, i32) {
    %c0_i32 = arith.constant 0 : i32
    %c0_i32_0 = arith.constant 0 : i32
    %c0_i32_1 = arith.constant 0 : i32
    return %c0_i32, %c0_i32_0 : i32, i32
  }
  func.func @transform_8(%arg0: i32, %arg1: memref<2x8xi32, #tpu.memory_space<smem>>, %arg2: memref<2x8xi32, #tpu.memory_space<smem>>, %arg3: memref<2xi32, #tpu.memory_space<smem>>) -> (i32, i32) {
    %c0_i32 = arith.constant 0 : i32
    %c0_i32_0 = arith.constant 0 : i32
    %c0_i32_1 = arith.constant 0 : i32
    return %c0_i32, %c0_i32_0 : i32, i32
  }
  func.func @transform_9(%arg0: i32, %arg1: memref<2x8xi32, #tpu.memory_space<smem>>, %arg2: memref<2x8xi32, #tpu.memory_space<smem>>, %arg3: memref<2xi32, #tpu.memory_space<smem>>) -> (i32, i32) {
    %c0_i32 = arith.constant 0 : i32
    %c0_i32_0 = arith.constant 0 : i32
    %c0_i32_1 = arith.constant 0 : i32
    return %c0_i32, %c0_i32_0 : i32, i32
  }
  func.func @transform_10(%arg0: i32, %arg1: memref<2x8xi32, #tpu.memory_space<smem>>, %arg2: memref<2x8xi32, #tpu.memory_space<smem>>, %arg3: memref<2xi32, #tpu.memory_space<smem>>) -> (i32, i32) {
    %c0_i32 = arith.constant 0 : i32
    %c0_i32_0 = arith.constant 0 : i32
    %c0_i32_1 = arith.constant 0 : i32
    return %c0_i32, %c0_i32_0 : i32, i32
  }
  func.func @transform_11(%arg0: i32, %arg1: memref<2x8xi32, #tpu.memory_space<smem>>, %arg2: memref<2x8xi32, #tpu.memory_space<smem>>, %arg3: memref<2xi32, #tpu.memory_space<smem>>) -> (i32, i32) {
    %c0_i32 = arith.constant 0 : i32
    %c0_i32_0 = arith.constant 0 : i32
    %c0_i32_1 = arith.constant 0 : i32
    return %c0_i32, %c0_i32_0 : i32, i32
  }
  func.func @transform_12(%arg0: i32, %arg1: memref<2x8xi32, #tpu.memory_space<smem>>, %arg2: memref<2x8xi32, #tpu.memory_space<smem>>, %arg3: memref<2xi32, #tpu.memory_space<smem>>) -> (i32, i32) {
    %c0_i32 = arith.constant 0 : i32
    %c0_i32_0 = arith.constant 0 : i32
    %c0_i32_1 = arith.constant 0 : i32
    return %c0_i32, %c0_i32_0 : i32, i32
  }
  func.func @transform_13(%arg0: i32, %arg1: memref<2x8xi32, #tpu.memory_space<smem>>, %arg2: memref<2x8xi32, #tpu.memory_space<smem>>, %arg3: memref<2xi32, #tpu.memory_space<smem>>) -> (i32, i32, i32) {
    %c0_i32 = arith.constant 0 : i32
    %c0_i32_0 = arith.constant 0 : i32
    %c0_i32_1 = arith.constant 0 : i32
    return %arg0, %c0_i32, %c0_i32_0 : i32, i32, i32
  }
}

</mosaic_0001>

<llo_original>
// kernel: tpu_custom_call.1
$region0: #{tpu_custom_call.1}
  #allocation0 [shape = 'u32[]', space=smem, size = 0x4, offset = 0x4, fixed_abs, tag = 'smem constant byte address 0x4 - core index']
  #allocation1 [shape = 'u32[144,128]{1,0:T(1,128)}', space=vmem, size = 0x12000, scoped, tag = 'internal scratch']
  #allocation2 [shape = 'f32[8,32]{1,0:T(8,128)}', space=vmem, size = 0x1000, scoped, tag = 'scratch operand']
  #allocation3 [shape = 's32[1]{0}', space=sflag, size = 0x4, scoped, tag = 'scoped memory for tpu_custom_call.1']
  #allocation4 [shape = 'u8[1024]{0}', space=smem, size = 0x400, scoped, tag = 'prefetched SMEM operand 0']
  #allocation5 [shape = 'u8[1024]{0}', space=smem, size = 0x400, scoped, tag = 'prefetched SMEM operand 1']
  #allocation6 [shape = 'u8[512]{0}', space=smem, size = 0x200, scoped, tag = 'prefetched SMEM operand 2']
  %s0 = inlined_call_operand.vmem [shape: s32[2,8], index: 0, kind: input, shape index: {}]
  %s1 = inlined_call_operand.vmem [shape: s32[2,8], index: 1, kind: input, shape index: {}]
  %s2 = inlined_call_operand.vmem [shape: s32[2], index: 2, kind: input, shape index: {}]
  %s3 = inlined_call_operand.vmem [shape: f32[64,32], index: 3, kind: input, shape index: {}]
  %s4 = inlined_call_operand.vmem [shape: f32[2,32], index: 4, kind: input, shape index: {}]
  %s5 = inlined_call_operand.vmem [shape: f32[8,32], index: 5, kind: input, shape index: {}]
  %s6 = inlined_call_operand.vmem [shape: f32[9,32], index: 6, kind: input, shape index: {}]
  %s7 = inlined_call_operand.vmem [shape: bf16[32,96], index: 7, kind: input, shape index: {}]
  %s8 = inlined_call_operand.vmem [shape: f32[1,96], index: 8, kind: input, shape index: {}]
  %s9 = inlined_call_operand.vmem [shape: bf16[32,32], index: 9, kind: input, shape index: {}]
  %s10 = inlined_call_operand.vmem [shape: bf16[32,128], index: 10, kind: input, shape index: {}]
  %s11 = inlined_call_operand.vmem [shape: f32[1,128], index: 11, kind: input, shape index: {}]
  %s12 = inlined_call_operand.vmem [shape: bf16[128,32], index: 12, kind: input, shape index: {}]
  %s13 = inlined_call_operand.vmem [shape: bf16[32,32], index: 13, kind: input, shape index: {}]
  %s14 = inlined_call_operand.vmem [shape: bf16[32,128], index: 14, kind: input, shape index: {}]
  %s15 = inlined_call_operand.vmem [shape: f32[1,128], index: 15, kind: input, shape index: {}]
  %s16 = inlined_call_operand.hbm [shape: f32[2,8,128], index: 16, kind: output, shape index: {}]
  %s17 = sld [smem:[#allocation0]]
  $region85: #{tpu_custom_call.1} parent=0
    _
  %s19 = ssub.s32 1, %s17
  %s20 = scalar_select 0, %s19, %s17
  %s21 = sshll.u32 %s0, 4
  %s22 = int_to_ptr.vmem [resolvable:$true] %s21
  %24 = dma.vmem_to_smem %s22, 32, [#allocation4], [#allocation3]
  %s25 = sshll.u32 %s1, 4
  %s26 = int_to_ptr.vmem [resolvable:$true] %s25
  %28 = dma.vmem_to_smem %s26, 32, [#allocation5], [#allocation3]
  %s29 = sshll.u32 %s2, 4
  %s30 = int_to_ptr.vmem [resolvable:$true] %s29
  %32 = dma.vmem_to_smem %s30, 16, [#allocation6], [#allocation3]
  %33 = dma.done [#allocation3], 80
  %34 = sfence
  $region1: #{tpu_custom_call.1} parent=0
    #allocation7 [shape = 'u8[8192]{0}', space=vmem, size = 0x2000, scoped, tag = 'output window, operand 0']
    #allocation8 [shape = 's32[2]{0}', space=sflag, size = 0x8, scoped, tag = 'scoped memory for tpu_custom_call.1']
    %35 = vsyncpa [#allocation8], 0
    %s36 = scalar_lea.sflag [#allocation8], 1
    %37 = vsyncpa %s36, 0
    loop: start=0, step=1, limit=4
    $region2: #{tpu_custom_call.1} parent=1 // loop_pre_header
      _
    $region3: #{tpu_custom_call.1} parent=1 // loop_header
      %s39 = sphi 0, %s43
      %p40 = scmp.ge.s32.totalorder %s39, 4
      %s47 = sphi 0, %s47
      %s49 = sphi 0, %s47
      %s50 = sphi 0, %s49
      %s64 = sphi 0, %s50
      %s68 = sphi 0, %s68
      %s70 = sphi 0, %s68
      %s71 = sphi 0, %s70
      %s85 = sphi 0, %s71
      %s89 = sphi 0, %s89
      %s91 = sphi 0, %s89
      %s92 = sphi 0, %s91
      %s106 = sphi 0, %s92
      %s110 = sphi 0, %s110
      %s112 = sphi 0, %s110
      %s113 = sphi 0, %s112
      %s127 = sphi 0, %s113
      %s131 = sphi 0, %s131
      %s133 = sphi 0, %s131
      %s134 = sphi 0, %s133
      %s148 = sphi 0, %s134
      %s152 = sphi 0, %s152
      %s154 = sphi 0, %s152
      %s155 = sphi 0, %s154
      %s169 = sphi 0, %s155
      %s173 = sphi 0, %s173
      %s175 = sphi 0, %s173
      %s176 = sphi 0, %s175
      %s190 = sphi 0, %s176
      %s194 = sphi 0, %s194
      %s196 = sphi 0, %s194
      %s197 = sphi 0, %s196
      %s211 = sphi 0, %s197
      %s215 = sphi 0, %s215
      %s217 = sphi 0, %s215
      %s218 = sphi 0, %s217
      %s232 = sphi 0, %s218
      %s236 = sphi 0, %s236
      %s238 = sphi 0, %s236
      %s239 = sphi 0, %s238
      %s253 = sphi 0, %s239
      %s257 = sphi 0, %s257
      %s259 = sphi 0, %s257
      %s260 = sphi 0, %s259
      %s274 = sphi 0, %s260
      %s278 = sphi 0, %s278
      %s280 = sphi 0, %s278
      %s281 = sphi 0, %s280
      %s295 = sphi 0, %s281
      %s299 = sphi 0, %s299
      %s301 = sphi 0, %s299
      %s302 = sphi 0, %s301
      %s316 = sphi 0, %s302
      %s322 = sphi 0, %s324
      %s325 = sphi 0, %s322
      %s326 = sphi 0, %s325
      %s342 = sphi 0, %s326
    $region4: #{tpu_custom_call.1} parent=1 // loop_header_branch
      %42 = sbr.rel (%p40) target = $region8
    $region5: #{tpu_custom_call.1} parent=1 // loop_body
      %s44 = ssub.s32 %s39, 1
      %s45 = ssub.s32 %s39, 2
      %s46 = sadd.s32 %s39, 1
      %s48 = sadd.s32 %s47, 1
      %p51 = scmp.eq.s32.totalorder %s39, 1
      %p52 = scmp.ne.s32.totalorder %s47, %s49
      %p53 = scmp.eq.s32.totalorder %s39, 0
      %p54 = por %p52, %p53
      %p55 = scmp.ne.s32.totalorder %s47, %s49
      %p56 = scmp.eq.s32.totalorder %s44, 1
      %p57 = por %p55, %p56
      %p58 = scmp.ne.s32.totalorder %s49, %s50
      %p59 = scmp.eq.s32.totalorder %s44, 0
      %p60 = por %p58, %p59
      %p61 = scmp.ne.s32.totalorder %s49, %s50
      %p62 = scmp.eq.s32.totalorder %s45, 1
      %p63 = por %p61, %p62
      %p65 = scmp.ne.s32.totalorder %s50, %s64
      %p66 = scmp.eq.s32.totalorder %s45, 0
      %p67 = por %p65, %p66
      %s69 = sadd.s32 %s68, 1
      %p72 = scmp.eq.s32.totalorder %s39, 1
      %p73 = scmp.ne.s32.totalorder %s68, %s70
      %p74 = scmp.eq.s32.totalorder %s39, 0
      %p75 = por %p73, %p74
      %p76 = scmp.ne.s32.totalorder %s68, %s70
      %p77 = scmp.eq.s32.totalorder %s44, 1
      %p78 = por %p76, %p77
      %p79 = scmp.ne.s32.totalorder %s70, %s71
      %p80 = scmp.eq.s32.totalorder %s44, 0
      %p81 = por %p79, %p80
      %p82 = scmp.ne.s32.totalorder %s70, %s71
      %p83 = scmp.eq.s32.totalorder %s45, 1
      %p84 = por %p82, %p83
      %p86 = scmp.ne.s32.totalorder %s71, %s85
      %p87 = scmp.eq.s32.totalorder %s45, 0
      %p88 = por %p86, %p87
      %s90 = sadd.s32 %s89, 1
      %p93 = scmp.eq.s32.totalorder %s39, 1
      %p94 = scmp.ne.s32.totalorder %s89, %s91
      %p95 = scmp.eq.s32.totalorder %s39, 0
      %p96 = por %p94, %p95
      %p97 = scmp.ne.s32.totalorder %s89, %s91
      %p98 = scmp.eq.s32.totalorder %s44, 1
      %p99 = por %p97, %p98
      %p100 = scmp.ne.s32.totalorder %s91, %s92
      %p101 = scmp.eq.s32.totalorder %s44, 0
      %p102 = por %p100, %p101
      %p103 = scmp.ne.s32.totalorder %s91, %s92
      %p104 = scmp.eq.s32.totalorder %s45, 1
      %p105 = por %p103, %p104
      %p107 = scmp.ne.s32.totalorder %s92, %s106
      %p108 = scmp.eq.s32.totalorder %s45, 0
      %p109 = por %p107, %p108
      %s111 = sadd.s32 %s110, 1
      %p114 = scmp.eq.s32.totalorder %s39, 1
      %p115 = scmp.ne.s32.totalorder %s110, %s112
      %p116 = scmp.eq.s32.totalorder %s39, 0
      %p117 = por %p115, %p116
      %p118 = scmp.ne.s32.totalorder %s110, %s112
      %p119 = scmp.eq.s32.totalorder %s44, 1
      %p120 = por %p118, %p119
      %p121 = scmp.ne.s32.totalorder %s112, %s113
      %p122 = scmp.eq.s32.totalorder %s44, 0
      %p123 = por %p121, %p122
      %p124 = scmp.ne.s32.totalorder %s112, %s113
      %p125 = scmp.eq.s32.totalorder %s45, 1
      %p126 = por %p124, %p125
      %p128 = scmp.ne.s32.totalorder %s113, %s127
      %p129 = scmp.eq.s32.totalorder %s45, 0
      %p130 = por %p128, %p129
      %s132 = sadd.s32 %s131, 1
      %p135 = scmp.eq.s32.totalorder %s39, 1
      %p136 = scmp.ne.s32.totalorder %s131, %s133
      %p137 = scmp.eq.s32.totalorder %s39, 0
      %p138 = por %p136, %p137
      %p139 = scmp.ne.s32.totalorder %s131, %s133
      %p140 = scmp.eq.s32.totalorder %s44, 1
      %p141 = por %p139, %p140
      %p142 = scmp.ne.s32.totalorder %s133, %s134
      %p143 = scmp.eq.s32.totalorder %s44, 0
      %p144 = por %p142, %p143
      %p145 = scmp.ne.s32.totalorder %s133, %s134
      %p146 = scmp.eq.s32.totalorder %s45, 1
      %p147 = por %p145, %p146
      %p149 = scmp.ne.s32.totalorder %s134, %s148
      %p150 = scmp.eq.s32.totalorder %s45, 0
      %p151 = por %p149, %p150
      %s153 = sadd.s32 %s152, 1
      %p156 = scmp.eq.s32.totalorder %s39, 1
      %p157 = scmp.ne.s32.totalorder %s152, %s154
      %p158 = scmp.eq.s32.totalorder %s39, 0
      %p159 = por %p157, %p158
      %p160 = scmp.ne.s32.totalorder %s152, %s154
      %p161 = scmp.eq.s32.totalorder %s44, 1
      %p162 = por %p160, %p161
      %p163 = scmp.ne.s32.totalorder %s154, %s155
      %p164 = scmp.eq.s32.totalorder %s44, 0
      %p165 = por %p163, %p164
      %p166 = scmp.ne.s32.totalorder %s154, %s155
      %p167 = scmp.eq.s32.totalorder %s45, 1
      %p168 = por %p166, %p167
      %p170 = scmp.ne.s32.totalorder %s155, %s169
      %p171 = scmp.eq.s32.totalorder %s45, 0
      %p172 = por %p170, %p171
      %s174 = sadd.s32 %s173, 1
      %p177 = scmp.eq.s32.totalorder %s39, 1
      %p178 = scmp.ne.s32.totalorder %s173, %s175
      %p179 = scmp.eq.s32.totalorder %s39, 0
      %p180 = por %p178, %p179
      %p181 = scmp.ne.s32.totalorder %s173, %s175
      %p182 = scmp.eq.s32.totalorder %s44, 1
      %p183 = por %p181, %p182
      %p184 = scmp.ne.s32.totalorder %s175, %s176
      %p185 = scmp.eq.s32.totalorder %s44, 0
      %p186 = por %p184, %p185
      %p187 = scmp.ne.s32.totalorder %s175, %s176
      %p188 = scmp.eq.s32.totalorder %s45, 1
      %p189 = por %p187, %p188
      %p191 = scmp.ne.s32.totalorder %s176, %s190
      %p192 = scmp.eq.s32.totalorder %s45, 0
      %p193 = por %p191, %p192
      %s195 = sadd.s32 %s194, 1
      %p198 = scmp.eq.s32.totalorder %s39, 1
      %p199 = scmp.ne.s32.totalorder %s194, %s196
      %p200 = scmp.eq.s32.totalorder %s39, 0
      %p201 = por %p199, %p200
      %p202 = scmp.ne.s32.totalorder %s194, %s196
      %p203 = scmp.eq.s32.totalorder %s44, 1
      %p204 = por %p202, %p203
      %p205 = scmp.ne.s32.totalorder %s196, %s197
      %p206 = scmp.eq.s32.totalorder %s44, 0
      %p207 = por %p205, %p206
      %p208 = scmp.ne.s32.totalorder %s196, %s197
      %p209 = scmp.eq.s32.totalorder %s45, 1
      %p210 = por %p208, %p209
      %p212 = scmp.ne.s32.totalorder %s197, %s211
      %p213 = scmp.eq.s32.totalorder %s45, 0
      %p214 = por %p212, %p213
      %s216 = sadd.s32 %s215, 1
      %p219 = scmp.eq.s32.totalorder %s39, 1
      %p220 = scmp.ne.s32.totalorder %s215, %s217
      %p221 = scmp.eq.s32.totalorder %s39, 0
      %p222 = por %p220, %p221
      %p223 = scmp.ne.s32.totalorder %s215, %s217
      %p224 = scmp.eq.s32.totalorder %s44, 1
      %p225 = por %p223, %p224
      %p226 = scmp.ne.s32.totalorder %s217, %s218
      %p227 = scmp.eq.s32.totalorder %s44, 0
      %p228 = por %p226, %p227
      %p229 = scmp.ne.s32.totalorder %s217, %s218
      %p230 = scmp.eq.s32.totalorder %s45, 1
      %p231 = por %p229, %p230
      %p233 = scmp.ne.s32.totalorder %s218, %s232
      %p234 = scmp.eq.s32.totalorder %s45, 0
      %p235 = por %p233, %p234
      %s237 = sadd.s32 %s236, 1
      %p240 = scmp.eq.s32.totalorder %s39, 1
      %p241 = scmp.ne.s32.totalorder %s236, %s238
      %p242 = scmp.eq.s32.totalorder %s39, 0
      %p243 = por %p241, %p242
      %p244 = scmp.ne.s32.totalorder %s236, %s238
      %p245 = scmp.eq.s32.totalorder %s44, 1
      %p246 = por %p244, %p245
      %p247 = scmp.ne.s32.totalorder %s238, %s239
      %p248 = scmp.eq.s32.totalorder %s44, 0
      %p249 = por %p247, %p248
      %p250 = scmp.ne.s32.totalorder %s238, %s239
      %p251 = scmp.eq.s32.totalorder %s45, 1
      %p252 = por %p250, %p251
      %p254 = scmp.ne.s32.totalorder %s239, %s253
      %p255 = scmp.eq.s32.totalorder %s45, 0
      %p256 = por %p254, %p255
      %s258 = sadd.s32 %s257, 1
      %p261 = scmp.eq.s32.totalorder %s39, 1
      %p262 = scmp.ne.s32.totalorder %s257, %s259
      %p263 = scmp.eq.s32.totalorder %s39, 0
      %p264 = por %p262, %p263
      %p265 = scmp.ne.s32.totalorder %s257, %s259
      %p266 = scmp.eq.s32.totalorder %s44, 1
      %p267 = por %p265, %p266
      %p268 = scmp.ne.s32.totalorder %s259, %s260
      %p269 = scmp.eq.s32.totalorder %s44, 0
      %p270 = por %p268, %p269
      %p271 = scmp.ne.s32.totalorder %s259, %s260
      %p272 = scmp.eq.s32.totalorder %s45, 1
      %p273 = por %p271, %p272
      %p275 = scmp.ne.s32.totalorder %s260, %s274
      %p276 = scmp.eq.s32.totalorder %s45, 0
      %p277 = por %p275, %p276
      %s279 = sadd.s32 %s278, 1
      %p282 = scmp.eq.s32.totalorder %s39, 1
      %p283 = scmp.ne.s32.totalorder %s278, %s280
      %p284 = scmp.eq.s32.totalorder %s39, 0
      %p285 = por %p283, %p284
      %p286 = scmp.ne.s32.totalorder %s278, %s280
      %p287 = scmp.eq.s32.totalorder %s44, 1
      %p288 = por %p286, %p287
      %p289 = scmp.ne.s32.totalorder %s280, %s281
      %p290 = scmp.eq.s32.totalorder %s44, 0
      %p291 = por %p289, %p290
      %p292 = scmp.ne.s32.totalorder %s280, %s281
      %p293 = scmp.eq.s32.totalorder %s45, 1
      %p294 = por %p292, %p293
      %p296 = scmp.ne.s32.totalorder %s281, %s295
      %p297 = scmp.eq.s32.totalorder %s45, 0
      %p298 = por %p296, %p297
      %s300 = sadd.s32 %s299, 1
      %p303 = scmp.eq.s32.totalorder %s39, 1
      %p304 = scmp.ne.s32.totalorder %s299, %s301
      %p305 = scmp.eq.s32.totalorder %s39, 0
      %p306 = por %p304, %p305
      %p307 = scmp.ne.s32.totalorder %s299, %s301
      %p308 = scmp.eq.s32.totalorder %s44, 1
      %p309 = por %p307, %p308
      %p310 = scmp.ne.s32.totalorder %s301, %s302
      %p311 = scmp.eq.s32.totalorder %s44, 0
      %p312 = por %p310, %p311
      %p313 = scmp.ne.s32.totalorder %s301, %s302
      %p314 = scmp.eq.s32.totalorder %s45, 1
      %p315 = por %p313, %p314
      %p317 = scmp.ne.s32.totalorder %s302, %s316
      %p318 = scmp.eq.s32.totalorder %s45, 0
      %p319 = por %p317, %p318
      %s320 = ssub.s32 %s39, %s46
      %p321 = scmp.eq.s32.totalorder %s320, 0
      %s323 = sadd.s32 %s322, 1
      %s324 = scalar_select %p321, %s322, %s323
      %p327 = pneg %p321
      %p328 = scmp.eq.s32.totalorder %s39, 1
      %p329 = por %p327, %p328
      %p330 = scmp.ne.s32.totalorder %s322, %s325
      %p331 = scmp.eq.s32.totalorder %s39, 0
      %p332 = por %p330, %p331
      %p333 = scmp.ne.s32.totalorder %s322, %s325
      %p334 = scmp.eq.s32.totalorder %s44, 1
      %p335 = por %p333, %p334
      %p336 = scmp.ne.s32.totalorder %s325, %s326
      %p337 = scmp.eq.s32.totalorder %s44, 0
      %p338 = por %p336, %p337
      %p339 = scmp.ne.s32.totalorder %s325, %s326
      %p340 = scmp.eq.s32.totalorder %s45, 1
      %p341 = por %p339, %p340
      %p343 = scmp.ne.s32.totalorder %s326, %s342
      %p344 = scmp.eq.s32.totalorder %s45, 0
      %p345 = por %p343, %p344
      %p346 = scmp.le.s32.totalorder 1, %s39
      %p347 = scmp.lt.s32.totalorder %s39, 3
      %p348 = pnand %p346, %p347
      %p349 = pneg %p348
      // Predicated region
      $region9: #{tpu_custom_call.1} parent=5 // pred_check
        _
      $region10: #{tpu_custom_call.1} parent=5 // pred_check_branch
        %351 = sbr.rel (%p348) target = $region12
      $region11: #{tpu_custom_call.1} parent=5 // pred_region
        %s352 = ssub.s32 %s39, 1
        // Predicated region
        $region13: #{tpu_custom_call.1} parent=11 // pred_check
          %p353 = pneg %p60
        $region14: #{tpu_custom_call.1} parent=11 // pred_check_branch
          %355 = sbr.rel (%p353) target = $region16
        $region15: #{tpu_custom_call.1} parent=11 // pred_region
          _
        $region16: #{tpu_custom_call.1} parent=11 // pred_fallthru
          _
        // Predicated region
        $region17: #{tpu_custom_call.1} parent=11 // pred_check
          %p356 = pneg %p81
        $region18: #{tpu_custom_call.1} parent=11 // pred_check_branch
          %358 = sbr.rel (%p356) target = $region20
        $region19: #{tpu_custom_call.1} parent=11 // pred_region
          _
        $region20: #{tpu_custom_call.1} parent=11 // pred_fallthru
          _
        // Predicated region
        $region21: #{tpu_custom_call.1} parent=11 // pred_check
          %p359 = pneg %p102
        $region22: #{tpu_custom_call.1} parent=11 // pred_check_branch
          %361 = sbr.rel (%p359) target = $region24
        $region23: #{tpu_custom_call.1} parent=11 // pred_region
          _
        $region24: #{tpu_custom_call.1} parent=11 // pred_fallthru
          _
        // Predicated region
        $region25: #{tpu_custom_call.1} parent=11 // pred_check
          %p362 = pneg %p123
        $region26: #{tpu_custom_call.1} parent=11 // pred_check_branch
          %364 = sbr.rel (%p362) target = $region28
        $region27: #{tpu_custom_call.1} parent=11 // pred_region
          _
        $region28: #{tpu_custom_call.1} parent=11 // pred_fallthru
          _
        // Predicated region
        $region29: #{tpu_custom_call.1} parent=11 // pred_check
          %p365 = pneg %p144
        $region30: #{tpu_custom_call.1} parent=11 // pred_check_branch
          %367 = sbr.rel (%p365) target = $region32
        $region31: #{tpu_custom_call.1} parent=11 // pred_region
          _
        $region32: #{tpu_custom_call.1} parent=11 // pred_fallthru
          _
        // Predicated region
        $region33: #{tpu_custom_call.1} parent=11 // pred_check
          %p368 = pneg %p165
        $region34: #{tpu_custom_call.1} parent=11 // pred_check_branch
          %370 = sbr.rel (%p368) target = $region36
        $region35: #{tpu_custom_call.1} parent=11 // pred_region
          _
        $region36: #{tpu_custom_call.1} parent=11 // pred_fallthru
          _
        // Predicated region
        $region37: #{tpu_custom_call.1} parent=11 // pred_check
          %p371 = pneg %p186
        $region38: #{tpu_custom_call.1} parent=11 // pred_check_branch
          %373 = sbr.rel (%p371) target = $region40
        $region39: #{tpu_custom_call.1} parent=11 // pred_region
          _
        $region40: #{tpu_custom_call.1} parent=11 // pred_fallthru
          _
        // Predicated region
        $region41: #{tpu_custom_call.1} parent=11 // pred_check
          %p374 = pneg %p207
        $region42: #{tpu_custom_call.1} parent=11 // pred_check_branch
          %376 = sbr.rel (%p374) target = $region44
        $region43: #{tpu_custom_call.1} parent=11 // pred_region
          _
        $region44: #{tpu_custom_call.1} parent=11 // pred_fallthru
          _
        // Predicated region
        $region45: #{tpu_custom_call.1} parent=11 // pred_check
          %p377 = pneg %p228
        $region46: #{tpu_custom_call.1} parent=11 // pred_check_branch
          %379 = sbr.rel (%p377) target = $region48
        $region47: #{tpu_custom_call.1} parent=11 // pred_region
          _
        $region48: #{tpu_custom_call.1} parent=11 // pred_fallthru
          _
        // Predicated region
        $region49: #{tpu_custom_call.1} parent=11 // pred_check
          %p380 = pneg %p249
        $region50: #{tpu_custom_call.1} parent=11 // pred_check_branch
          %382 = sbr.rel (%p380) target = $region52
        $region51: #{tpu_custom_call.1} parent=11 // pred_region
          _
        $region52: #{tpu_custom_call.1} parent=11 // pred_fallthru
          _
        // Predicated region
        $region53: #{tpu_custom_call.1} parent=11 // pred_check
          %p383 = pneg %p270
        $region54: #{tpu_custom_call.1} parent=11 // pred_check_branch
          %385 = sbr.rel (%p383) target = $region56
        $region55: #{tpu_custom_call.1} parent=11 // pred_region
          _
        $region56: #{tpu_custom_call.1} parent=11 // pred_fallthru
          _
        // Predicated region
        $region57: #{tpu_custom_call.1} parent=11 // pred_check
          %p386 = pneg %p291
        $region58: #{tpu_custom_call.1} parent=11 // pred_check_branch
          %388 = sbr.rel (%p386) target = $region60
        $region59: #{tpu_custom_call.1} parent=11 // pred_region
          _
        $region60: #{tpu_custom_call.1} parent=11 // pred_fallthru
          _
        // Predicated region
        $region61: #{tpu_custom_call.1} parent=11 // pred_check
          %p389 = pneg %p312
        $region62: #{tpu_custom_call.1} parent=11 // pred_check_branch
          %391 = sbr.rel (%p389) target = $region64
        $region63: #{tpu_custom_call.1} parent=11 // pred_region
          _
        $region64: #{tpu_custom_call.1} parent=11 // pred_fallthru
          _
      $region12: #{tpu_custom_call.1} parent=5 // pred_fallthru
        _
      %p392 = scmp.lt.s32.totalorder %s39, 2
      // Predicated region
      $region65: #{tpu_custom_call.1} parent=5 // pred_check
        %p393 = pneg %p392
      $region66: #{tpu_custom_call.1} parent=5 // pred_check_branch
        %395 = sbr.rel (%p393) target = $region68
      $region67: #{tpu_custom_call.1} parent=5 // pred_region
        _
      $region68: #{tpu_custom_call.1} parent=5 // pred_fallthru
        _
      %p396 = scmp.le.s32.totalorder 1, %s39
      %p397 = scmp.lt.s32.totalorder %s39, 3
      %p398 = pnand %p396, %p397
      %p399 = pneg %p398
      // Predicated region
      $region69: #{tpu_custom_call.1} parent=5 // pred_check
        _
      $region70: #{tpu_custom_call.1} parent=5 // pred_check_branch
        %401 = sbr.rel (%p398) target = $region72
      $region71: #{tpu_custom_call.1} parent=5 // pred_region
        %s402 = ssub.s32 %s39, 1
        %p403 = pneg %p60
        %p404 = pneg %p57
        %p405 = pneg %p81
        %p406 = pneg %p78
        %p407 = pneg %p102
        %p408 = pneg %p99
        %p409 = pneg %p123
        %p410 = pneg %p120
        %p411 = pneg %p144
        %p412 = pneg %p141
        %p413 = pneg %p165
        %p414 = pneg %p162
        %p415 = pneg %p186
        %p416 = pneg %p183
        %p417 = pneg %p207
        %p418 = pneg %p204
        %p419 = pneg %p228
        %p420 = pneg %p225
        %p421 = pneg %p249
        %p422 = pneg %p246
        %p423 = pneg %p270
        %p424 = pneg %p267
        %p425 = pneg %p291
        %p426 = pneg %p288
        %p427 = pneg %p312
        %p428 = pneg %p309
        %p429 = pneg %p338
        %p430 = pneg %p335
        %s431 = sand.u32 %s325, 1
        %s432 = scalar_lea.sflag [#allocation8], %s431
        %s433 = sand.u32 %s325, 1
        %s434 = smul.addr %s433, 8
        %s435 = scalar_lea.vmem [#allocation7], %s434
        %s437 = smul.u32 %s44, 128
        %s438 = sld [smem:[#allocation4 + %s437]]
        %s439 = sld [smem:[#allocation5 + %s437]]
        %s440 = scalar_lea.vmem %s3, %s438
        %v441 = vld [vmem:[%s440] sm:$0x1]
        %s442 = scalar_lea.vmem %s4, %s439
        %v443 = vld [vmem:[%s442] sm:$0x1]
        %v444 = vadd.f32 %v441, %v443
        %vm445 = vcmask 253952
        %446 = vst.msk [vmem:[#allocation2] sm:$0x1] %vm445, %v444
        %s447 = sadd.s32 %s437, 1
        %s448 = sld [smem:[#allocation4 + %s447]]
        %s449 = sld [smem:[#allocation5 + %s447]]
        %s450 = scalar_lea.vmem %s3, %s448
        %v451 = vld [vmem:[%s450] sm:$0x1]
        %s452 = scalar_lea.vmem %s4, %s449
        %v453 = vld [vmem:[%s452] sm:$0x1]
        %v454 = vadd.f32 %v451, %v453
        %455 = vst.msk [vmem:[#allocation2 + $0x1] sm:$0x1] %vm445, %v454
        %s456 = sadd.s32 %s437, 2
        %s457 = sld [smem:[#allocation4 + %s456]]
        %s458 = sld [smem:[#allocation5 + %s456]]
        %s459 = scalar_lea.vmem %s3, %s457
        %v460 = vld [vmem:[%s459] sm:$0x1]
        %s461 = scalar_lea.vmem %s4, %s458
        %v462 = vld [vmem:[%s461] sm:$0x1]
        %v463 = vadd.f32 %v460, %v462
        %464 = vst.msk [vmem:[#allocation2 + $0x2] sm:$0x1] %vm445, %v463
        %s465 = sadd.s32 %s437, 3
        %s466 = sld [smem:[#allocation4 + %s465]]
        %s467 = sld [smem:[#allocation5 + %s465]]
        %s468 = scalar_lea.vmem %s3, %s466
        %v469 = vld [vmem:[%s468] sm:$0x1]
        %s470 = scalar_lea.vmem %s4, %s467
        %v471 = vld [vmem:[%s470] sm:$0x1]
        %v472 = vadd.f32 %v469, %v471
        %473 = vst.msk [vmem:[#allocation2 + $0x3] sm:$0x1] %vm445, %v472
        %s474 = sadd.s32 %s437, 4
        %s475 = sld [smem:[#allocation4 + %s474]]
        %s476 = sld [smem:[#allocation5 + %s474]]
        %s477 = scalar_lea.vmem %s3, %s475
        %v478 = vld [vmem:[%s477] sm:$0x1]
        %s479 = scalar_lea.vmem %s4, %s476
        %v480 = vld [vmem:[%s479] sm:$0x1]
        %v481 = vadd.f32 %v478, %v480
        %482 = vst.msk [vmem:[#allocation2 + $0x4] sm:$0x1] %vm445, %v481
        %s483 = sadd.s32 %s437, 5
        %s484 = sld [smem:[#allocation4 + %s483]]
        %s485 = sld [smem:[#allocation5 + %s483]]
        %s486 = scalar_lea.vmem %s3, %s484
        %v487 = vld [vmem:[%s486] sm:$0x1]
        %s488 = scalar_lea.vmem %s4, %s485
        %v489 = vld [vmem:[%s488] sm:$0x1]
        %v490 = vadd.f32 %v487, %v489
        %491 = vst.msk [vmem:[#allocation2 + $0x5] sm:$0x1] %vm445, %v490
        %s492 = sadd.s32 %s437, 6
        %s493 = sld [smem:[#allocation4 + %s492]]
        %s494 = sld [smem:[#allocation5 + %s492]]
        %s495 = scalar_lea.vmem %s3, %s493
        %v496 = vld [vmem:[%s495] sm:$0x1]
        %s497 = scalar_lea.vmem %s4, %s494
        %v498 = vld [vmem:[%s497] sm:$0x1]
        %v499 = vadd.f32 %v496, %v498
        %500 = vst.msk [vmem:[#allocation2 + $0x6] sm:$0x1] %vm445, %v499
        %s501 = sadd.s32 %s437, 7
        %s502 = sld [smem:[#allocation4 + %s501]]
        %s503 = sld [smem:[#allocation5 + %s501]]
        %s504 = scalar_lea.vmem %s3, %s502
        %v505 = vld [vmem:[%s504] sm:$0x1]
        %s506 = scalar_lea.vmem %s4, %s503
        %v507 = vld [vmem:[%s506] sm:$0x1]
        %v508 = vadd.f32 %v505, %v507
        %509 = vst.msk [vmem:[#allocation2 + $0x7] sm:$0x1] %vm445, %v508
        %v510 = vld [vmem:[#allocation2] sm:$0xff]
        %v511 = vld [vmem:[%s5] sm:$0xff]
        %v512 = vadd.f32 %v510, %v511
        %v513 = vld [vmem:[%s6] sm:$0x1]
        %v514 = vld [vmem:[%s6 + $0x1] sm:$0x1]
        %vm515 = vcmask 261120
        %v516 = vsel %vm515, %v512, 0.0
        %517 = vadd.xlane.f32.xlu0 %v516
        %v518 = vpop.xlane.xlu0 %517
        %v519 = vrcp.pop 32.0
        %v520 = vmul.f32 %v518, %v519
        %v521 = vsub.f32 %v512, %v520
        %v522 = vmul.f32 %v521, %v521
        %v523 = vsel %vm515, %v522, 0.0
        %524 = vadd.xlane.f32.xlu0 %v523
        %v525 = vpop.xlane.xlu0 %524
        %v526 = vmul.f32 %v525, %v519
        %v527 = vadd.f32 %v526, 1e-12
        %v528 = vrsqrt.pop %v527
        %v529 = vmul.f32 %v521, %v528
        %v530 = vlaneseq
        %v531 = vshrl.u32 %v530, 7
        %v532 = vsub.s32 0, %v531
        %v533 = vrot.slane %v513, %v532
        %v534 = vmul.f32 %v529, %v533
        %v535 = vlaneseq
        %v536 = vshrl.u32 %v535, 7
        %v537 = vsub.s32 0, %v536
        %v538 = vrot.slane %v514, %v537
        %v539 = vadd.f32 %v534, %v538
        %v540 = vlaneseq
        %v541 = vand.u32 %v540, 127
        %s542 = sld [smem:[#allocation6 + %s44]]
        %v543 = vstv %s542
        %vm544 = vcmp.lt.s32.totalorder %v541, %v543
        %v545 = vsel %vm544, 0.0, -1e+09
        %v546 = vpack.c.bf16 %v539, %v539
        %v547 = vld [vmem:[%s7] sm:$0xf]
        %v548 = vld [vmem:[%s7 + $0x4] sm:$0xf]
        %v549 = vld [vmem:[%s7 + $0x8] sm:$0xf]
        %v550 = vld [vmem:[%s7 + $0xc] sm:$0xf]
        %v551 = vld [vmem:[%s8] sm:$0x1]
        %v553 = vlaneseq
        %v554 = vshrl.u32 %v553, 7
        %v555 = vsub.s32 0, %v554
        %v556 = vrot.slane %v551, %v555
        %v562 = vunpack.c.l.b16 %v547
        %v563 = vunpack.c.l.b16 %v548
        %v564 = vunpack.c.l.b16 %v549
        %v565 = vunpack.c.l.b16 %v550
        %v566 = vpack.c.b16 %v563, %v562
        %v567 = vpack.c.b16 %v565, %v564
        %v571 = vsel %vm515, %v546, 0
        %573 = vmatprep.subr.bf16.mxu0 0
        %574 = vmatpush1.bf16.msra.mxu0 %v566
        %575 = vmatprep.subr.bf16.mxu0 0
        %576 = vmatpush1.bf16.msra.mxu0 %v567
        %577 = vmatprep.subr.bf16.mxu0 0
        %578 = vmatpush1.bf16.msra.mxu0 0
        %579 = vmatprep.subr.bf16.mxu0 0
        %580 = vmatpush1.bf16.msra.mxu0 0
        %581 = vmatprep.subr.bf16.mxu0 0
        %582 = vmatpush1.bf16.msra.mxu0 0
        %583 = vmatprep.subr.bf16.mxu0 0
        %584 = vmatpush1.bf16.msra.mxu0 0
        %585 = vmatprep.subr.bf16.mxu0 0
        %586 = vmatpush1.bf16.msra.mxu0 0
        %587 = vmatprep.subr.bf16.mxu0 0
        %588 = vmatpush1.bf16.msra.mxu0 0
        %589 = vmatprep.subr.bf16.mxu0 0
        %590 = vmatpush1.bf16.msra.mxu0 0
        %591 = vmatprep.subr.bf16.mxu0 0
        %592 = vmatpush1.bf16.msra.mxu0 0
        %593 = vmatprep.subr.bf16.mxu0 0
        %594 = vmatpush1.bf16.msra.mxu0 0
        %595 = vmatprep.subr.bf16.mxu0 0
        %596 = vmatpush1.bf16.msra.mxu0 0
        %597 = vmatprep.subr.bf16.mxu0 0
        %598 = vmatpush1.bf16.msra.mxu0 0
        %599 = vmatprep.subr.bf16.mxu0 0
        %600 = vmatpush1.bf16.msra.mxu0 0
        %601 = vmatprep.subr.bf16.mxu0 0
        %602 = vmatpush1.bf16.msra.mxu0 0
        %603 = vmatprep.subr.bf16.mxu0 0
        %604 = vmatpush1.bf16.msra.mxu0 0
        %605 = vmatprep.mubr.bf16.mxu0 0
        %606 = vmatmul.mubr.bf16.gmra.mrb[0].mxu0 %v571
        %v607 = vpop.f32.mrb[0].mxu0
        %v608 = vadd.f32 %v556, %v607
        %v609 = vpop.f32.mrb[0].mxu0
        %v610 = vpop.f32.mrb[0].mxu0
        %v611 = vpop.f32.mrb[0].mxu0
        %612 = vdwg.mxu0
        %614 = vrot.lane.b32.xlu0 %v608, 112
        %v615 = vpop.permute.xlu0 %614
        %v617 = vcombine.high %v608, 0.0
        %v619 = vunpack.c.l.s4 1983009808
        %v620 = vunpack.c.0.s8 %v619
        %v621 = vlaneseq
        %v622 = vshrl.u32 %v621, 7
        %v623 = vsub.s32 %v620, %v622
        %v624 = vrot.slane %v608, %v623
        %v626 = vunpack.c.l.s4 1983009808
        %v627 = vunpack.c.0.s8 %v626
        %v628 = vlaneseq
        %v629 = vshrl.u32 %v628, 7
        %v630 = vsub.s32 %v627, %v629
        %v631 = vrot.slane %v617, %v630
        %v632 = vcombine.high %v615, 0.0
        %v634 = vunpack.c.l.s4 1983009808
        %v635 = vunpack.c.0.s8 %v634
        %v636 = vlaneseq
        %v637 = vshrl.u32 %v636, 7
        %v638 = vsub.s32 %v635, %v637
        %v639 = vrot.slane %v615, %v638
        %v641 = vunpack.c.l.s4 1983009808
        %v642 = vunpack.c.0.s8 %v641
        %v643 = vlaneseq
        %v644 = vshrl.u32 %v643, 7
        %v645 = vsub.s32 %v642, %v644
        %v646 = vrot.slane %v632, %v645
        %v647 = vcombine.low %v624, %v639
        %v648 = vcombine.high %v624, %v639
        %v650 = vunpack.c.l.s4 1934713408
        %v651 = vunpack.c.0.s8 %v650
        %v652 = vlaneseq
        %v653 = vshrl.u32 %v652, 7
        %v654 = vsub.s32 %v651, %v653
        %v655 = vrot.slane %v647, %v654
        %v657 = vunpack.c.l.s4 1934713408
        %v658 = vunpack.c.0.s8 %v657
        %v659 = vlaneseq
        %v660 = vshrl.u32 %v659, 7
        %v661 = vsub.s32 %v658, %v660
        %v662 = vrot.slane %v648, %v661
        %v663 = vcombine.low %v631, %v646
        %v664 = vcombine.high %v631, %v646
        %v666 = vunpack.c.l.s4 1934713408
        %v667 = vunpack.c.0.s8 %v666
        %v668 = vlaneseq
        %v669 = vshrl.u32 %v668, 7
        %v670 = vsub.s32 %v667, %v669
        %v671 = vrot.slane %v663, %v670
        %v673 = vunpack.c.l.s4 1934713408
        %v674 = vunpack.c.0.s8 %v673
        %v675 = vlaneseq
        %v676 = vshrl.u32 %v675, 7
        %v677 = vsub.s32 %v674, %v676
        %v678 = vrot.slane %v664, %v677
        %v679 = vcombine.high %v655, 0.0
        %v680 = vcombine.high %v662, 0.0
        %v681 = vcombine.high %v671, 0.0
        %v682 = vcombine.high %v678, 0.0
        %v683 = vcombine.low %v655, %v662
        %v685 = vunpack.c.l.s4 1983009808
        %v686 = vunpack.c.0.s8 %v685
        %v687 = vlaneseq
        %v688 = vshrl.u32 %v687, 7
        %v689 = vsub.s32 %v686, %v688
        %v690 = vrot.slane %v683, %v689
        %v691 = vcombine.low %v679, %v680
        %v693 = vunpack.c.l.s4 1983009808
        %v694 = vunpack.c.0.s8 %v693
        %v695 = vlaneseq
        %v696 = vshrl.u32 %v695, 7
        %v697 = vsub.s32 %v694, %v696
        %v698 = vrot.slane %v691, %v697
        %v699 = vcombine.low %v671, %v678
        %v701 = vunpack.c.l.s4 1983009808
        %v702 = vunpack.c.0.s8 %v701
        %v703 = vlaneseq
        %v704 = vshrl.u32 %v703, 7
        %v705 = vsub.s32 %v702, %v704
        %v706 = vrot.slane %v699, %v705
        %v707 = vcombine.low %v681, %v682
        %v709 = vunpack.c.l.s4 1983009808
        %v710 = vunpack.c.0.s8 %v709
        %v711 = vlaneseq
        %v712 = vshrl.u32 %v711, 7
        %v713 = vsub.s32 %v710, %v712
        %v714 = vrot.slane %v707, %v713
        %v715 = vcombine.low %v690, %v698
        %v717 = vunpack.c.l.s4 1934713408
        %v718 = vunpack.c.0.s8 %v717
        %v719 = vlaneseq
        %v720 = vshrl.u32 %v719, 7
        %v721 = vsub.s32 %v718, %v720
        %v722 = vrot.slane %v715, %v721
        %v723 = vcombine.low %v706, %v714
        %v725 = vunpack.c.l.s4 1934713408
        %v726 = vunpack.c.0.s8 %v725
        %v727 = vlaneseq
        %v728 = vshrl.u32 %v727, 7
        %v729 = vsub.s32 %v726, %v728
        %v730 = vrot.slane %v723, %v729
        %v731 = vcombine.low %v722, %v730
        %v732 = vcombine.high %v722, %v730
        %733 = vrot.lane.b32.xlu0 %v608, 96
        %v734 = vpop.permute.xlu0 %733
        %735 = vrot.lane.b32.xlu0 %v615, 96
        %v736 = vpop.permute.xlu0 %735
        %v739 = vcombine.high %v734, 0.0
        %v741 = vunpack.c.l.s4 1983009808
        %v742 = vunpack.c.0.s8 %v741
        %v743 = vlaneseq
        %v744 = vshrl.u32 %v743, 7
        %v745 = vsub.s32 %v742, %v744
        %v746 = vrot.slane %v734, %v745
        %v748 = vunpack.c.l.s4 1983009808
        %v749 = vunpack.c.0.s8 %v748
        %v750 = vlaneseq
        %v751 = vshrl.u32 %v750, 7
        %v752 = vsub.s32 %v749, %v751
        %v753 = vrot.slane %v739, %v752
        %v754 = vcombine.high %v736, 0.0
        %v756 = vunpack.c.l.s4 1983009808
        %v757 = vunpack.c.0.s8 %v756
        %v758 = vlaneseq
        %v759 = vshrl.u32 %v758, 7
        %v760 = vsub.s32 %v757, %v759
        %v761 = vrot.slane %v736, %v760
        %v763 = vunpack.c.l.s4 1983009808
        %v764 = vunpack.c.0.s8 %v763
        %v765 = vlaneseq
        %v766 = vshrl.u32 %v765, 7
        %v767 = vsub.s32 %v764, %v766
        %v768 = vrot.slane %v754, %v767
        %v769 = vcombine.low %v746, %v761
        %v770 = vcombine.high %v746, %v761
        %v772 = vunpack.c.l.s4 1934713408
        %v773 = vunpack.c.0.s8 %v772
        %v774 = vlaneseq
        %v775 = vshrl.u32 %v774, 7
        %v776 = vsub.s32 %v773, %v775
        %v777 = vrot.slane %v769, %v776
        %v779 = vunpack.c.l.s4 1934713408
        %v780 = vunpack.c.0.s8 %v779
        %v781 = vlaneseq
        %v782 = vshrl.u32 %v781, 7
        %v783 = vsub.s32 %v780, %v782
        %v784 = vrot.slane %v770, %v783
        %v785 = vcombine.low %v753, %v768
        %v786 = vcombine.high %v753, %v768
        %v788 = vunpack.c.l.s4 1934713408
        %v789 = vunpack.c.0.s8 %v788
        %v790 = vlaneseq
        %v791 = vshrl.u32 %v790, 7
        %v792 = vsub.s32 %v789, %v791
        %v793 = vrot.slane %v785, %v792
        %v795 = vunpack.c.l.s4 1934713408
        %v796 = vunpack.c.0.s8 %v795
        %v797 = vlaneseq
        %v798 = vshrl.u32 %v797, 7
        %v799 = vsub.s32 %v796, %v798
        %v800 = vrot.slane %v786, %v799
        %v801 = vcombine.high %v777, 0.0
        %v802 = vcombine.high %v784, 0.0
        %v803 = vcombine.high %v793, 0.0
        %v804 = vcombine.high %v800, 0.0
        %v805 = vcombine.low %v777, %v784
        %v807 = vunpack.c.l.s4 1983009808
        %v808 = vunpack.c.0.s8 %v807
        %v809 = vlaneseq
        %v810 = vshrl.u32 %v809, 7
        %v811 = vsub.s32 %v808, %v810
        %v812 = vrot.slane %v805, %v811
        %v813 = vcombine.low %v801, %v802
        %v815 = vunpack.c.l.s4 1983009808
        %v816 = vunpack.c.0.s8 %v815
        %v817 = vlaneseq
        %v818 = vshrl.u32 %v817, 7
        %v819 = vsub.s32 %v816, %v818
        %v820 = vrot.slane %v813, %v819
        %v821 = vcombine.low %v793, %v800
        %v823 = vunpack.c.l.s4 1983009808
        %v824 = vunpack.c.0.s8 %v823
        %v825 = vlaneseq
        %v826 = vshrl.u32 %v825, 7
        %v827 = vsub.s32 %v824, %v826
        %v828 = vrot.slane %v821, %v827
        %v829 = vcombine.low %v803, %v804
        %v831 = vunpack.c.l.s4 1983009808
        %v832 = vunpack.c.0.s8 %v831
        %v833 = vlaneseq
        %v834 = vshrl.u32 %v833, 7
        %v835 = vsub.s32 %v832, %v834
        %v836 = vrot.slane %v829, %v835
        %v837 = vcombine.low %v812, %v820
        %v839 = vunpack.c.l.s4 1934713408
        %v840 = vunpack.c.0.s8 %v839
        %v841 = vlaneseq
        %v842 = vshrl.u32 %v841, 7
        %v843 = vsub.s32 %v840, %v842
        %v844 = vrot.slane %v837, %v843
        %v845 = vcombine.low %v828, %v836
        %v847 = vunpack.c.l.s4 1934713408
        %v848 = vunpack.c.0.s8 %v847
        %v849 = vlaneseq
        %v850 = vshrl.u32 %v849, 7
        %v851 = vsub.s32 %v848, %v850
        %v852 = vrot.slane %v845, %v851
        %v853 = vcombine.low %v844, %v852
        %v854 = vcombine.high %v844, %v852
        %855 = vrot.lane.b32.xlu0 %v608, 64
        %v856 = vpop.permute.xlu0 %855
        %857 = vrot.lane.b32.xlu0 %v615, 64
        %v858 = vpop.permute.xlu0 %857
        %v861 = vcombine.high %v856, 0.0
        %v863 = vunpack.c.l.s4 1983009808
        %v864 = vunpack.c.0.s8 %v863
        %v865 = vlaneseq
        %v866 = vshrl.u32 %v865, 7
        %v867 = vsub.s32 %v864, %v866
        %v868 = vrot.slane %v856, %v867
        %v870 = vunpack.c.l.s4 1983009808
        %v871 = vunpack.c.0.s8 %v870
        %v872 = vlaneseq
        %v873 = vshrl.u32 %v872, 7
        %v874 = vsub.s32 %v871, %v873
        %v875 = vrot.slane %v861, %v874
        %v876 = vcombine.high %v858, 0.0
        %v878 = vunpack.c.l.s4 1983009808
        %v879 = vunpack.c.0.s8 %v878
        %v880 = vlaneseq
        %v881 = vshrl.u32 %v880, 7
        %v882 = vsub.s32 %v879, %v881
        %v883 = vrot.slane %v858, %v882
        %v885 = vunpack.c.l.s4 1983009808
        %v886 = vunpack.c.0.s8 %v885
        %v887 = vlaneseq
        %v888 = vshrl.u32 %v887, 7
        %v889 = vsub.s32 %v886, %v888
        %v890 = vrot.slane %v876, %v889
        %v891 = vcombine.low %v868, %v883
        %v892 = vcombine.high %v868, %v883
        %v894 = vunpack.c.l.s4 1934713408
        %v895 = vunpack.c.0.s8 %v894
        %v896 = vlaneseq
        %v897 = vshrl.u32 %v896, 7
        %v898 = vsub.s32 %v895, %v897
        %v899 = vrot.slane %v891, %v898
        %v901 = vunpack.c.l.s4 1934713408
        %v902 = vunpack.c.0.s8 %v901
        %v903 = vlaneseq
        %v904 = vshrl.u32 %v903, 7
        %v905 = vsub.s32 %v902, %v904
        %v906 = vrot.slane %v892, %v905
        %v907 = vcombine.low %v875, %v890
        %v908 = vcombine.high %v875, %v890
        %v910 = vunpack.c.l.s4 1934713408
        %v911 = vunpack.c.0.s8 %v910
        %v912 = vlaneseq
        %v913 = vshrl.u32 %v912, 7
        %v914 = vsub.s32 %v911, %v913
        %v915 = vrot.slane %v907, %v914
        %v917 = vunpack.c.l.s4 1934713408
        %v918 = vunpack.c.0.s8 %v917
        %v919 = vlaneseq
        %v920 = vshrl.u32 %v919, 7
        %v921 = vsub.s32 %v918, %v920
        %v922 = vrot.slane %v908, %v921
        %v923 = vcombine.high %v899, 0.0
        %v924 = vcombine.high %v906, 0.0
        %v925 = vcombine.high %v915, 0.0
        %v926 = vcombine.high %v922, 0.0
        %v927 = vcombine.low %v899, %v906
        %v929 = vunpack.c.l.s4 1983009808
        %v930 = vunpack.c.0.s8 %v929
        %v931 = vlaneseq
        %v932 = vshrl.u32 %v931, 7
        %v933 = vsub.s32 %v930, %v932
        %v934 = vrot.slane %v927, %v933
        %v935 = vcombine.low %v923, %v924
        %v937 = vunpack.c.l.s4 1983009808
        %v938 = vunpack.c.0.s8 %v937
        %v939 = vlaneseq
        %v940 = vshrl.u32 %v939, 7
        %v941 = vsub.s32 %v938, %v940
        %v942 = vrot.slane %v935, %v941
        %v943 = vcombine.low %v915, %v922
        %v945 = vunpack.c.l.s4 1983009808
        %v946 = vunpack.c.0.s8 %v945
        %v947 = vlaneseq
        %v948 = vshrl.u32 %v947, 7
        %v949 = vsub.s32 %v946, %v948
        %v950 = vrot.slane %v943, %v949
        %v951 = vcombine.low %v925, %v926
        %v953 = vunpack.c.l.s4 1983009808
        %v954 = vunpack.c.0.s8 %v953
        %v955 = vlaneseq
        %v956 = vshrl.u32 %v955, 7
        %v957 = vsub.s32 %v954, %v956
        %v958 = vrot.slane %v951, %v957
        %v959 = vcombine.low %v934, %v942
        %v961 = vunpack.c.l.s4 1934713408
        %v962 = vunpack.c.0.s8 %v961
        %v963 = vlaneseq
        %v964 = vshrl.u32 %v963, 7
        %v965 = vsub.s32 %v962, %v964
        %v966 = vrot.slane %v959, %v965
        %v967 = vcombine.low %v950, %v958
        %v969 = vunpack.c.l.s4 1934713408
        %v970 = vunpack.c.0.s8 %v969
        %v971 = vlaneseq
        %v972 = vshrl.u32 %v971, 7
        %v973 = vsub.s32 %v970, %v972
        %v974 = vrot.slane %v967, %v973
        %v975 = vcombine.low %v966, %v974
        %v976 = vcombine.high %v966, %v974
        %v977 = vpack.c.bf16 %v731, %v731
        %v978 = vpack.c.bf16 %v732, %v732
        %v979 = vpack.c.bf16 %v853, %v853
        %v980 = vpack.c.bf16 %v854, %v854
        %vm981 = vcmask 130048
        %v983 = vsel %vm981, %v977, 0
        %v986 = vsel %vm981, %v979, 0
        %988 = vmatprep.subr.bf16.mxu0 0
        %989 = vmatpush1.bf16.xpose.msra.mxu0 %v986
        %990 = vmatprep.subr.bf16.mxu0 0
        %991 = vmatpush1.bf16.xpose.msra.mxu0 0
        %992 = vmatprep.subr.bf16.mxu0 0
        %993 = vmatpush1.bf16.xpose.msra.mxu0 0
        %994 = vmatprep.subr.bf16.mxu0 0
        %995 = vmatpush1.bf16.xpose.msra.mxu0 0
        %996 = vmatprep.subr.bf16.mxu0 0
        %997 = vmatpush1.bf16.xpose.msra.mxu0 0
        %998 = vmatprep.subr.bf16.mxu0 0
        %999 = vmatpush1.bf16.xpose.msra.mxu0 0
        %1000 = vmatprep.subr.bf16.mxu0 0
        %1001 = vmatpush1.bf16.xpose.msra.mxu0 0
        %1002 = vmatprep.subr.bf16.mxu0 0
        %1003 = vmatpush1.bf16.xpose.msra.mxu0 0
        %1004 = vmatprep.subr.bf16.mxu0 0
        %1005 = vmatpush1.bf16.xpose.msra.mxu0 0
        %1006 = vmatprep.subr.bf16.mxu0 0
        %1007 = vmatpush1.bf16.xpose.msra.mxu0 0
        %1008 = vmatprep.subr.bf16.mxu0 0
        %1009 = vmatpush1.bf16.xpose.msra.mxu0 0
        %1010 = vmatprep.subr.bf16.mxu0 0
        %1011 = vmatpush1.bf16.xpose.msra.mxu0 0
        %1012 = vmatprep.subr.bf16.mxu0 0
        %1013 = vmatpush1.bf16.xpose.msra.mxu0 0
        %1014 = vmatprep.subr.bf16.mxu0 0
        %1015 = vmatpush1.bf16.xpose.msra.mxu0 0
        %1016 = vmatprep.subr.bf16.mxu0 0
        %1017 = vmatpush1.bf16.xpose.msra.mxu0 0
        %1018 = vmatprep.subr.bf16.mxu0 0
        %1019 = vmatpush1.bf16.xpose.msra.mxu0 0
        %1020 = vmatprep.mubr.bf16.mxu0 0
        %1021 = vmatmul.mubr.bf16.gmra.mrb[0].mxu0 %v983
        %v1022 = vpop.f32.mrb[0].mxu0
        %v1023 = vadd.f32 0.0, %v1022
        %v1024 = vpop.f32.mrb[0].mxu0
        %v1025 = vpop.f32.mrb[0].mxu0
        %v1026 = vpop.f32.mrb[0].mxu0
        %1027 = vdwg.mxu0
        %v1029 = vsel %vm981, %v978, 0
        %v1032 = vsel %vm981, %v980, 0
        %1034 = vmatprep.subr.bf16.mxu0 0
        %1035 = vmatpush1.bf16.xpose.msra.mxu0 %v1032
        %1036 = vmatprep.subr.bf16.mxu0 0
        %1037 = vmatpush1.bf16.xpose.msra.mxu0 0
        %1038 = vmatprep.subr.bf16.mxu0 0
        %1039 = vmatpush1.bf16.xpose.msra.mxu0 0
        %1040 = vmatprep.subr.bf16.mxu0 0
        %1041 = vmatpush1.bf16.xpose.msra.mxu0 0
        %1042 = vmatprep.subr.bf16.mxu0 0
        %1043 = vmatpush1.bf16.xpose.msra.mxu0 0
        %1044 = vmatprep.subr.bf16.mxu0 0
        %1045 = vmatpush1.bf16.xpose.msra.mxu0 0
        %1046 = vmatprep.subr.bf16.mxu0 0
        %1047 = vmatpush1.bf16.xpose.msra.mxu0 0
        %1048 = vmatprep.subr.bf16.mxu0 0
        %1049 = vmatpush1.bf16.xpose.msra.mxu0 0
        %1050 = vmatprep.subr.bf16.mxu0 0
        %1051 = vmatpush1.bf16.xpose.msra.mxu0 0
        %1052 = vmatprep.subr.bf16.mxu0 0
        %1053 = vmatpush1.bf16.xpose.msra.mxu0 0
        %1054 = vmatprep.subr.bf16.mxu0 0
        %1055 = vmatpush1.bf16.xpose.msra.mxu0 0
        %1056 = vmatprep.subr.bf16.mxu0 0
        %1057 = vmatpush1.bf16.xpose.msra.mxu0 0
        %1058 = vmatprep.subr.bf16.mxu0 0
        %1059 = vmatpush1.bf16.xpose.msra.mxu0 0
        %1060 = vmatprep.subr.bf16.mxu0 0
        %1061 = vmatpush1.bf16.xpose.msra.mxu0 0
        %1062 = vmatprep.subr.bf16.mxu0 0
        %1063 = vmatpush1.bf16.xpose.msra.mxu0 0
        %1064 = vmatprep.subr.bf16.mxu0 0
        %1065 = vmatpush1.bf16.xpose.msra.mxu0 0
        %1066 = vmatprep.mubr.bf16.mxu0 0
        %1067 = vmatmul.mubr.bf16.gmra.mrb[0].mxu0 %v1029
        %v1068 = vpop.f32.mrb[0].mxu0
        %v1069 = vadd.f32 0.0, %v1068
        %v1070 = vpop.f32.mrb[0].mxu0
        %v1071 = vpop.f32.mrb[0].mxu0
        %v1072 = vpop.f32.mrb[0].mxu0
        %1073 = vdwg.mxu0
        %v1074 = vmul.f32 %v1023, 0.25
        %v1075 = vmul.f32 %v1069, 0.25
        %v1076 = vadd.f32 %v1074, %v545
        %v1077 = vadd.f32 %v1075, %v545
        %vm1078 = vcmask 64512
        %v1079 = vsel %vm1078, %v1076, -inf
        %1080 = vmax.xlane.f32.xlu0 %v1079
        %v1081 = vpop.xlane.xlu0 %1080
        %v1082 = vsel %vm1078, %v1077, -inf
        %1083 = vmax.xlane.f32.xlu0 %v1082
        %v1084 = vpop.xlane.xlu0 %1083
        %v1085 = vsub.f32 %v1076, %v1081
        %v1086 = vsub.f32 %v1077, %v1084
        %v1087 = vmul.f32 %v1085, 1.442695
        %v1088 = vpow.pop %v1087
        %v1089 = vmul.f32 %v1086, 1.442695
        %v1090 = vpow.pop %v1089
        %v1091 = vsel %vm1078, %v1088, 0.0
        %1092 = vadd.xlane.f32.xlu0 %v1091
        %v1093 = vpop.xlane.xlu0 %1092
        %v1094 = vsel %vm1078, %v1090, 0.0
        %1095 = vadd.xlane.f32.xlu0 %v1094
        %v1096 = vpop.xlane.xlu0 %1095
        %v1097 = vrcp.pop %v1093
        %v1098 = vrcp.pop %v1096
        %v1099 = vmul.f32 %v1088, %v1097
        %v1100 = vmul.f32 %v1090, %v1098
        %v1101 = vpack.c.bf16 %v1099, %v1099
        %v1102 = vpack.c.bf16 %v1100, %v1100
        %v1103 = vpack.c.bf16 %v975, %v975
        %v1104 = vpack.c.bf16 %v976, %v976
        %v1106 = vsel %vm1078, %v1101, 0
        %vm1108 = vcmask 1043456
        %v1110 = vsel %vm1108, %v1103, 0
        %1112 = vmatprep.subr.bf16.mxu0 0
        %1113 = vmatpush1.bf16.msra.mxu0 %v1110
        %1114 = vmatprep.subr.bf16.mxu0 0
        %1115 = vmatpush1.bf16.msra.mxu0 0
        %1116 = vmatprep.subr.bf16.mxu0 0
        %1117 = vmatpush1.bf16.msra.mxu0 0
        %1118 = vmatprep.subr.bf16.mxu0 0
        %1119 = vmatpush1.bf16.msra.mxu0 0
        %1120 = vmatprep.subr.bf16.mxu0 0
        %1121 = vmatpush1.bf16.msra.mxu0 0
        %1122 = vmatprep.subr.bf16.mxu0 0
        %1123 = vmatpush1.bf16.msra.mxu0 0
        %1124 = vmatprep.subr.bf16.mxu0 0
        %1125 = vmatpush1.bf16.msra.mxu0 0
        %1126 = vmatprep.subr.bf16.mxu0 0
        %1127 = vmatpush1.bf16.msra.mxu0 0
        %1128 = vmatprep.subr.bf16.mxu0 0
        %1129 = vmatpush1.bf16.msra.mxu0 0
        %1130 = vmatprep.subr.bf16.mxu0 0
        %1131 = vmatpush1.bf16.msra.mxu0 0
        %1132 = vmatprep.subr.bf16.mxu0 0
        %1133 = vmatpush1.bf16.msra.mxu0 0
        %1134 = vmatprep.subr.bf16.mxu0 0
        %1135 = vmatpush1.bf16.msra.mxu0 0
        %1136 = vmatprep.subr.bf16.mxu0 0
        %1137 = vmatpush1.bf16.msra.mxu0 0
        %1138 = vmatprep.subr.bf16.mxu0 0
        %1139 = vmatpush1.bf16.msra.mxu0 0
        %1140 = vmatprep.subr.bf16.mxu0 0
        %1141 = vmatpush1.bf16.msra.mxu0 0
        %1142 = vmatprep.subr.bf16.mxu0 0
        %1143 = vmatpush1.bf16.msra.mxu0 0
        %1144 = vmatprep.mubr.bf16.mxu0 0
        %1145 = vmatmul.mubr.bf16.gmra.mrb[0].mxu0 %v1106
        %v1146 = vpop.f32.mrb[0].mxu0
        %v1147 = vadd.f32 0.0, %v1146
        %v1148 = vpop.f32.mrb[0].mxu0
        %v1149 = vpop.f32.mrb[0].mxu0
        %v1150 = vpop.f32.mrb[0].mxu0
        %1151 = vdwg.mxu0
        %v1153 = vsel %vm1078, %v1102, 0
        %v1156 = vsel %vm1108, %v1104, 0
        %1158 = vmatprep.subr.bf16.mxu0 0
        %1159 = vmatpush1.bf16.msra.mxu0 %v1156
        %1160 = vmatprep.subr.bf16.mxu0 0
        %1161 = vmatpush1.bf16.msra.mxu0 0
        %1162 = vmatprep.subr.bf16.mxu0 0
        %1163 = vmatpush1.bf16.msra.mxu0 0
        %1164 = vmatprep.subr.bf16.mxu0 0
        %1165 = vmatpush1.bf16.msra.mxu0 0
        %1166 = vmatprep.subr.bf16.mxu0 0
        %1167 = vmatpush1.bf16.msra.mxu0 0
        %1168 = vmatprep.subr.bf16.mxu0 0
        %1169 = vmatpush1.bf16.msra.mxu0 0
        %1170 = vmatprep.subr.bf16.mxu0 0
        %1171 = vmatpush1.bf16.msra.mxu0 0
        %1172 = vmatprep.subr.bf16.mxu0 0
        %1173 = vmatpush1.bf16.msra.mxu0 0
        %1174 = vmatprep.subr.bf16.mxu0 0
        %1175 = vmatpush1.bf16.msra.mxu0 0
        %1176 = vmatprep.subr.bf16.mxu0 0
        %1177 = vmatpush1.bf16.msra.mxu0 0
        %1178 = vmatprep.subr.bf16.mxu0 0
        %1179 = vmatpush1.bf16.msra.mxu0 0
        %1180 = vmatprep.subr.bf16.mxu0 0
        %1181 = vmatpush1.bf16.msra.mxu0 0
        %1182 = vmatprep.subr.bf16.mxu0 0
        %1183 = vmatpush1.bf16.msra.mxu0 0
        %1184 = vmatprep.subr.bf16.mxu0 0
        %1185 = vmatpush1.bf16.msra.mxu0 0
        %1186 = vmatprep.subr.bf16.mxu0 0
        %1187 = vmatpush1.bf16.msra.mxu0 0
        %1188 = vmatprep.subr.bf16.mxu0 0
        %1189 = vmatpush1.bf16.msra.mxu0 0
        %1190 = vmatprep.mubr.bf16.mxu0 0
        %1191 = vmatmul.mubr.bf16.gmra.mrb[0].mxu0 %v1153
        %v1192 = vpop.f32.mrb[0].mxu0
        %v1193 = vadd.f32 0.0, %v1192
        %v1194 = vpop.f32.mrb[0].mxu0
        %v1195 = vpop.f32.mrb[0].mxu0
        %v1196 = vpop.f32.mrb[0].mxu0
        %1197 = vdwg.mxu0
        %v1198 = vcombine.high %v1147, 0.0
        %v1200 = vunpack.c.l.s4 1983009808
        %v1201 = vunpack.c.0.s8 %v1200
        %v1202 = vlaneseq
        %v1203 = vshrl.u32 %v1202, 7
        %v1204 = vsub.s32 %v1201, %v1203
        %v1205 = vrot.slane %v1147, %v1204
        %v1207 = vunpack.c.l.s4 1983009808
        %v1208 = vunpack.c.0.s8 %v1207
        %v1209 = vlaneseq
        %v1210 = vshrl.u32 %v1209, 7
        %v1211 = vsub.s32 %v1208, %v1210
        %v1212 = vrot.slane %v1198, %v1211
        %v1213 = vcombine.high %v1193, 0.0
        %v1215 = vunpack.c.l.s4 1983009808
        %v1216 = vunpack.c.0.s8 %v1215
        %v1217 = vlaneseq
        %v1218 = vshrl.u32 %v1217, 7
        %v1219 = vsub.s32 %v1216, %v1218
        %v1220 = vrot.slane %v1193, %v1219
        %v1222 = vunpack.c.l.s4 1983009808
        %v1223 = vunpack.c.0.s8 %v1222
        %v1224 = vlaneseq
        %v1225 = vshrl.u32 %v1224, 7
        %v1226 = vsub.s32 %v1223, %v1225
        %v1227 = vrot.slane %v1213, %v1226
        %v1228 = vcombine.low %v1205, %v1220
        %v1229 = vcombine.high %v1205, %v1220
        %v1231 = vunpack.c.l.s4 1934713408
        %v1232 = vunpack.c.0.s8 %v1231
        %v1233 = vlaneseq
        %v1234 = vshrl.u32 %v1233, 7
        %v1235 = vsub.s32 %v1232, %v1234
        %v1236 = vrot.slane %v1228, %v1235
        %v1238 = vunpack.c.l.s4 1934713408
        %v1239 = vunpack.c.0.s8 %v1238
        %v1240 = vlaneseq
        %v1241 = vshrl.u32 %v1240, 7
        %v1242 = vsub.s32 %v1239, %v1241
        %v1243 = vrot.slane %v1229, %v1242
        %v1244 = vcombine.low %v1212, %v1227
        %v1245 = vcombine.high %v1212, %v1227
        %v1247 = vunpack.c.l.s4 1934713408
        %v1248 = vunpack.c.0.s8 %v1247
        %v1249 = vlaneseq
        %v1250 = vshrl.u32 %v1249, 7
        %v1251 = vsub.s32 %v1248, %v1250
        %v1252 = vrot.slane %v1244, %v1251
        %v1254 = vunpack.c.l.s4 1934713408
        %v1255 = vunpack.c.0.s8 %v1254
        %v1256 = vlaneseq
        %v1257 = vshrl.u32 %v1256, 7
        %v1258 = vsub.s32 %v1255, %v1257
        %v1259 = vrot.slane %v1245, %v1258
        %v1260 = vcombine.high %v1236, 0.0
        %v1261 = vcombine.high %v1243, 0.0
        %v1262 = vcombine.high %v1252, 0.0
        %v1263 = vcombine.high %v1259, 0.0
        %v1264 = vcombine.low %v1236, %v1243
        %v1266 = vunpack.c.l.s4 1983009808
        %v1267 = vunpack.c.0.s8 %v1266
        %v1268 = vlaneseq
        %v1269 = vshrl.u32 %v1268, 7
        %v1270 = vsub.s32 %v1267, %v1269
        %v1271 = vrot.slane %v1264, %v1270
        %v1272 = vcombine.low %v1260, %v1261
        %v1274 = vunpack.c.l.s4 1983009808
        %v1275 = vunpack.c.0.s8 %v1274
        %v1276 = vlaneseq
        %v1277 = vshrl.u32 %v1276, 7
        %v1278 = vsub.s32 %v1275, %v1277
        %v1279 = vrot.slane %v1272, %v1278
        %v1280 = vcombine.low %v1252, %v1259
        %v1282 = vunpack.c.l.s4 1983009808
        %v1283 = vunpack.c.0.s8 %v1282
        %v1284 = vlaneseq
        %v1285 = vshrl.u32 %v1284, 7
        %v1286 = vsub.s32 %v1283, %v1285
        %v1287 = vrot.slane %v1280, %v1286
        %v1288 = vcombine.low %v1262, %v1263
        %v1290 = vunpack.c.l.s4 1983009808
        %v1291 = vunpack.c.0.s8 %v1290
        %v1292 = vlaneseq
        %v1293 = vshrl.u32 %v1292, 7
        %v1294 = vsub.s32 %v1291, %v1293
        %v1295 = vrot.slane %v1288, %v1294
        %v1296 = vcombine.low %v1271, %v1279
        %v1298 = vunpack.c.l.s4 1934713408
        %v1299 = vunpack.c.0.s8 %v1298
        %v1300 = vlaneseq
        %v1301 = vshrl.u32 %v1300, 7
        %v1302 = vsub.s32 %v1299, %v1301
        %v1303 = vrot.slane %v1296, %v1302
        %v1304 = vcombine.low %v1287, %v1295
        %v1306 = vunpack.c.l.s4 1934713408
        %v1307 = vunpack.c.0.s8 %v1306
        %v1308 = vlaneseq
        %v1309 = vshrl.u32 %v1308, 7
        %v1310 = vsub.s32 %v1307, %v1309
        %v1311 = vrot.slane %v1304, %v1310
        %v1312 = vcombine.low %v1303, %v1311
        %v1313 = vcombine.high %v1303, %v1311
        %1315 = vrot.lane.b32.xlu0 %v1313, 16
        %v1316 = vpop.permute.xlu0 %1315
        %v1318 = vsel %vm981, %v1312, %v1316
        %v1319 = vpack.c.bf16 %v1318, %v1318
        %v1320 = vld [vmem:[%s9] sm:$0xf]
        %v1321 = vld [vmem:[%s9 + $0x4] sm:$0xf]
        %v1322 = vld [vmem:[%s9 + $0x8] sm:$0xf]
        %v1323 = vld [vmem:[%s9 + $0xc] sm:$0xf]
        %v1328 = vunpack.c.l.b16 %v1320
        %v1329 = vunpack.c.l.b16 %v1321
        %v1330 = vunpack.c.l.b16 %v1322
        %v1331 = vunpack.c.l.b16 %v1323
        %v1332 = vpack.c.b16 %v1329, %v1328
        %v1333 = vpack.c.b16 %v1331, %v1330
        %v1337 = vsel %vm515, %v1319, 0
        %1339 = vmatprep.subr.bf16.mxu0 0
        %1340 = vmatpush1.bf16.msra.mxu0 %v1332
        %1341 = vmatprep.subr.bf16.mxu0 0
        %1342 = vmatpush1.bf16.msra.mxu0 %v1333
        %1343 = vmatprep.subr.bf16.mxu0 0
        %1344 = vmatpush1.bf16.msra.mxu0 0
        %1345 = vmatprep.subr.bf16.mxu0 0
        %1346 = vmatpush1.bf16.msra.mxu0 0
        %1347 = vmatprep.subr.bf16.mxu0 0
        %1348 = vmatpush1.bf16.msra.mxu0 0
        %1349 = vmatprep.subr.bf16.mxu0 0
        %1350 = vmatpush1.bf16.msra.mxu0 0
        %1351 = vmatprep.subr.bf16.mxu0 0
        %1352 = vmatpush1.bf16.msra.mxu0 0
        %1353 = vmatprep.subr.bf16.mxu0 0
        %1354 = vmatpush1.bf16.msra.mxu0 0
        %1355 = vmatprep.subr.bf16.mxu0 0
        %1356 = vmatpush1.bf16.msra.mxu0 0
        %1357 = vmatprep.subr.bf16.mxu0 0
        %1358 = vmatpush1.bf16.msra.mxu0 0
        %1359 = vmatprep.subr.bf16.mxu0 0
        %1360 = vmatpush1.bf16.msra.mxu0 0
        %1361 = vmatprep.subr.bf16.mxu0 0
        %1362 = vmatpush1.bf16.msra.mxu0 0
        %1363 = vmatprep.subr.bf16.mxu0 0
        %1364 = vmatpush1.bf16.msra.mxu0 0
        %1365 = vmatprep.subr.bf16.mxu0 0
        %1366 = vmatpush1.bf16.msra.mxu0 0
        %1367 = vmatprep.subr.bf16.mxu0 0
        %1368 = vmatpush1.bf16.msra.mxu0 0
        %1369 = vmatprep.subr.bf16.mxu0 0
        %1370 = vmatpush1.bf16.msra.mxu0 0
        %1371 = vmatprep.mubr.bf16.mxu0 0
        %1372 = vmatmul.mubr.bf16.gmra.mrb[0].mxu0 %v1337
        %v1373 = vpop.f32.mrb[0].mxu0
        %v1374 = vadd.f32 0.0, %v1373
        %v1375 = vpop.f32.mrb[0].mxu0
        %v1376 = vpop.f32.mrb[0].mxu0
        %v1377 = vpop.f32.mrb[0].mxu0
        %1378 = vdwg.mxu0
        %v1379 = vadd.f32 %v539, %v1374
        %v1380 = vld [vmem:[%s6 + $0x2] sm:$0x1]
        %v1381 = vlaneseq
        %v1382 = vshrl.u32 %v1381, 7
        %v1383 = vsub.s32 0, %v1382
        %v1384 = vrot.slane %v1380, %v1383
        %v1385 = vadd.f32 %v1379, %v1384
        %v1386 = vld [vmem:[%s6 + $0x3] sm:$0x1]
        %v1387 = vld [vmem:[%s6 + $0x4] sm:$0x1]
        %v1388 = vsel %vm515, %v1385, 0.0
        %1389 = vadd.xlane.f32.xlu0 %v1388
        %v1390 = vpop.xlane.xlu0 %1389
        %v1391 = vmul.f32 %v1390, %v519
        %v1392 = vsub.f32 %v1385, %v1391
        %v1393 = vmul.f32 %v1392, %v1392
        %v1394 = vsel %vm515, %v1393, 0.0
        %1395 = vadd.xlane.f32.xlu0 %v1394
        %v1396 = vpop.xlane.xlu0 %1395
        %v1397 = vmul.f32 %v1396, %v519
        %v1398 = vadd.f32 %v1397, 1e-12
        %v1399 = vrsqrt.pop %v1398
        %v1400 = vmul.f32 %v1392, %v1399
        %v1401 = vlaneseq
        %v1402 = vshrl.u32 %v1401, 7
        %v1403 = vsub.s32 0, %v1402
        %v1404 = vrot.slane %v1386, %v1403
        %v1405 = vmul.f32 %v1400, %v1404
        %v1406 = vlaneseq
        %v1407 = vshrl.u32 %v1406, 7
        %v1408 = vsub.s32 0, %v1407
        %v1409 = vrot.slane %v1387, %v1408
        %v1410 = vadd.f32 %v1405, %v1409
        %v1411 = vpack.c.bf16 %v1410, %v1410
        %v1412 = vld [vmem:[%s10] sm:$0xf]
        %v1413 = vld [vmem:[%s10 + $0x4] sm:$0xf]
        %v1414 = vld [vmem:[%s10 + $0x8] sm:$0xf]
        %v1415 = vld [vmem:[%s10 + $0xc] sm:$0xf]
        %v1416 = vld [vmem:[%s11] sm:$0x1]
        %v1418 = vlaneseq
        %v1419 = vshrl.u32 %v1418, 7
        %v1420 = vsub.s32 0, %v1419
        %v1421 = vrot.slane %v1416, %v1420
        %v1427 = vunpack.c.l.b16 %v1412
        %v1428 = vunpack.c.l.b16 %v1413
        %v1429 = vunpack.c.l.b16 %v1414
        %v1430 = vunpack.c.l.b16 %v1415
        %v1431 = vpack.c.b16 %v1428, %v1427
        %v1432 = vpack.c.b16 %v1430, %v1429
        %v1436 = vsel %vm515, %v1411, 0
        %1438 = vmatprep.subr.bf16.mxu0 0
        %1439 = vmatpush1.bf16.msra.mxu0 %v1431
        %1440 = vmatprep.subr.bf16.mxu0 0
        %1441 = vmatpush1.bf16.msra.mxu0 %v1432
        %1442 = vmatprep.subr.bf16.mxu0 0
        %1443 = vmatpush1.bf16.msra.mxu0 0
        %1444 = vmatprep.subr.bf16.mxu0 0
        %1445 = vmatpush1.bf16.msra.mxu0 0
        %1446 = vmatprep.subr.bf16.mxu0 0
        %1447 = vmatpush1.bf16.msra.mxu0 0
        %1448 = vmatprep.subr.bf16.mxu0 0
        %1449 = vmatpush1.bf16.msra.mxu0 0
        %1450 = vmatprep.subr.bf16.mxu0 0
        %1451 = vmatpush1.bf16.msra.mxu0 0
        %1452 = vmatprep.subr.bf16.mxu0 0
        %1453 = vmatpush1.bf16.msra.mxu0 0
        %1454 = vmatprep.subr.bf16.mxu0 0
        %1455 = vmatpush1.bf16.msra.mxu0 0
        %1456 = vmatprep.subr.bf16.mxu0 0
        %1457 = vmatpush1.bf16.msra.mxu0 0
        %1458 = vmatprep.subr.bf16.mxu0 0
        %1459 = vmatpush1.bf16.msra.mxu0 0
        %1460 = vmatprep.subr.bf16.mxu0 0
        %1461 = vmatpush1.bf16.msra.mxu0 0
        %1462 = vmatprep.subr.bf16.mxu0 0
        %1463 = vmatpush1.bf16.msra.mxu0 0
        %1464 = vmatprep.subr.bf16.mxu0 0
        %1465 = vmatpush1.bf16.msra.mxu0 0
        %1466 = vmatprep.subr.bf16.mxu0 0
        %1467 = vmatpush1.bf16.msra.mxu0 0
        %1468 = vmatprep.subr.bf16.mxu0 0
        %1469 = vmatpush1.bf16.msra.mxu0 0
        %1470 = vmatprep.mubr.bf16.mxu0 0
        %1471 = vmatmul.mubr.bf16.gmra.mrb[0].mxu0 %v1436
        %v1472 = vpop.f32.mrb[0].mxu0
        %v1473 = vadd.f32 %v1421, %v1472
        %v1474 = vpop.f32.mrb[0].mxu0
        %v1475 = vpop.f32.mrb[0].mxu0
        %v1476 = vpop.f32.mrb[0].mxu0
        %1477 = vdwg.mxu0
        %v1478 = vmul.f32 %v1473, %v1473
        %v1479 = vmul.f32 %v1473, %v1478
        %v1480 = vmul.f32 %v1479, 0.044715
        %v1481 = vadd.f32 %v1473, %v1480
        %v1482 = vmul.f32 %v1481, 0.7978846
        %v1483 = vtanh.pop %v1482
        %v1484 = vadd.f32 %v1483, 1.0
        %v1485 = vmul.f32 %v1484, 0.5
        %v1486 = vmul.f32 %v1473, %v1485
        %v1487 = vpack.c.bf16 %v1486, %v1486
        %v1488 = vld [vmem:[%s12] sm:$0xf]
        %v1489 = vld [vmem:[%s12 + $0x4] sm:$0xf]
        %v1490 = vld [vmem:[%s12 + $0x8] sm:$0xf]
        %v1491 = vld [vmem:[%s12 + $0xc] sm:$0xf]
        %v1492 = vld [vmem:[%s12 + $0x10] sm:$0xf]
        %v1493 = vld [vmem:[%s12 + $0x14] sm:$0xf]
        %v1494 = vld [vmem:[%s12 + $0x18] sm:$0xf]
        %v1495 = vld [vmem:[%s12 + $0x1c] sm:$0xf]
        %v1496 = vld [vmem:[%s12 + $0x20] sm:$0xf]
        %v1497 = vld [vmem:[%s12 + $0x24] sm:$0xf]
        %v1498 = vld [vmem:[%s12 + $0x28] sm:$0xf]
        %v1499 = vld [vmem:[%s12 + $0x2c] sm:$0xf]
        %v1500 = vld [vmem:[%s12 + $0x30] sm:$0xf]
        %v1501 = vld [vmem:[%s12 + $0x34] sm:$0xf]
        %v1502 = vld [vmem:[%s12 + $0x38] sm:$0xf]
        %v1503 = vld [vmem:[%s12 + $0x3c] sm:$0xf]
        %v1520 = vunpack.c.l.b16 %v1488
        %v1521 = vunpack.c.l.b16 %v1489
        %v1522 = vunpack.c.l.b16 %v1490
        %v1523 = vunpack.c.l.b16 %v1491
        %v1524 = vunpack.c.l.b16 %v1492
        %v1525 = vunpack.c.l.b16 %v1493
        %v1526 = vunpack.c.l.b16 %v1494
        %v1527 = vunpack.c.l.b16 %v1495
        %v1528 = vunpack.c.l.b16 %v1496
        %v1529 = vunpack.c.l.b16 %v1497
        %v1530 = vunpack.c.l.b16 %v1498
        %v1531 = vunpack.c.l.b16 %v1499
        %v1532 = vunpack.c.l.b16 %v1500
        %v1533 = vunpack.c.l.b16 %v1501
        %v1534 = vunpack.c.l.b16 %v1502
        %v1535 = vunpack.c.l.b16 %v1503
        %v1536 = vpack.c.b16 %v1521, %v1520
        %v1537 = vpack.c.b16 %v1523, %v1522
        %v1538 = vpack.c.b16 %v1525, %v1524
        %v1539 = vpack.c.b16 %v1527, %v1526
        %v1540 = vpack.c.b16 %v1529, %v1528
        %v1541 = vpack.c.b16 %v1531, %v1530
        %v1542 = vpack.c.b16 %v1533, %v1532
        %v1543 = vpack.c.b16 %v1535, %v1534
        %1552 = vmatprep.subr.bf16.mxu0 0
        %1553 = vmatpush1.bf16.msra.mxu0 %v1536
        %1554 = vmatprep.subr.bf16.mxu0 0
        %1555 = vmatpush1.bf16.msra.mxu0 %v1537
        %1556 = vmatprep.subr.bf16.mxu0 0
        %1557 = vmatpush1.bf16.msra.mxu0 %v1538
        %1558 = vmatprep.subr.bf16.mxu0 0
        %1559 = vmatpush1.bf16.msra.mxu0 %v1539
        %1560 = vmatprep.subr.bf16.mxu0 0
        %1561 = vmatpush1.bf16.msra.mxu0 %v1540
        %1562 = vmatprep.subr.bf16.mxu0 0
        %1563 = vmatpush1.bf16.msra.mxu0 %v1541
        %1564 = vmatprep.subr.bf16.mxu0 0
        %1565 = vmatpush1.bf16.msra.mxu0 %v1542
        %1566 = vmatprep.subr.bf16.mxu0 0
        %1567 = vmatpush1.bf16.msra.mxu0 %v1543
        %1568 = vmatprep.subr.bf16.mxu0 0
        %1569 = vmatpush1.bf16.msra.mxu0 0
        %1570 = vmatprep.subr.bf16.mxu0 0
        %1571 = vmatpush1.bf16.msra.mxu0 0
        %1572 = vmatprep.subr.bf16.mxu0 0
        %1573 = vmatpush1.bf16.msra.mxu0 0
        %1574 = vmatprep.subr.bf16.mxu0 0
        %1575 = vmatpush1.bf16.msra.mxu0 0
        %1576 = vmatprep.subr.bf16.mxu0 0
        %1577 = vmatpush1.bf16.msra.mxu0 0
        %1578 = vmatprep.subr.bf16.mxu0 0
        %1579 = vmatpush1.bf16.msra.mxu0 0
        %1580 = vmatprep.subr.bf16.mxu0 0
        %1581 = vmatpush1.bf16.msra.mxu0 0
        %1582 = vmatprep.subr.bf16.mxu0 0
        %1583 = vmatpush1.bf16.msra.mxu0 0
        %1584 = vmatprep.mubr.bf16.mxu0 0
        %1585 = vmatmul.mubr.bf16.gmra.mrb[0].mxu0 %v1487
        %v1586 = vpop.f32.mrb[0].mxu0
        %v1587 = vadd.f32 0.0, %v1586
        %v1588 = vpop.f32.mrb[0].mxu0
        %v1589 = vpop.f32.mrb[0].mxu0
        %v1590 = vpop.f32.mrb[0].mxu0
        %1591 = vdwg.mxu0
        %v1592 = vadd.f32 %v1410, %v1587
        %v1593 = vld [vmem:[%s6 + $0x5] sm:$0x1]
        %v1594 = vlaneseq
        %v1595 = vshrl.u32 %v1594, 7
        %v1596 = vsub.s32 0, %v1595
        %v1597 = vrot.slane %v1593, %v1596
        %v1598 = vadd.f32 %v1592, %v1597
        %v1599 = vld [vmem:[%s6 + $0x6] sm:$0x1]
        %v1600 = vld [vmem:[%s6 + $0x7] sm:$0x1]
        %v1601 = vsel %vm515, %v1598, 0.0
        %1602 = vadd.xlane.f32.xlu0 %v1601
        %v1603 = vpop.xlane.xlu0 %1602
        %v1604 = vmul.f32 %v1603, %v519
        %v1605 = vsub.f32 %v1598, %v1604
        %v1606 = vmul.f32 %v1605, %v1605
        %v1607 = vsel %vm515, %v1606, 0.0
        %1608 = vadd.xlane.f32.xlu0 %v1607
        %v1609 = vpop.xlane.xlu0 %1608
        %v1610 = vmul.f32 %v1609, %v519
        %v1611 = vadd.f32 %v1610, 1e-12
        %v1612 = vrsqrt.pop %v1611
        %v1613 = vmul.f32 %v1605, %v1612
        %v1614 = vlaneseq
        %v1615 = vshrl.u32 %v1614, 7
        %v1616 = vsub.s32 0, %v1615
        %v1617 = vrot.slane %v1599, %v1616
        %v1618 = vmul.f32 %v1613, %v1617
        %v1619 = vlaneseq
        %v1620 = vshrl.u32 %v1619, 7
        %v1621 = vsub.s32 0, %v1620
        %v1622 = vrot.slane %v1600, %v1621
        %v1623 = vadd.f32 %v1618, %v1622
        %v1624 = vpack.c.bf16 %v1623, %v1623
        %v1625 = vld [vmem:[%s13] sm:$0xf]
        %v1626 = vld [vmem:[%s13 + $0x4] sm:$0xf]
        %v1627 = vld [vmem:[%s13 + $0x8] sm:$0xf]
        %v1628 = vld [vmem:[%s13 + $0xc] sm:$0xf]
        %v1629 = vld [vmem:[%s6 + $0x8] sm:$0x1]
        %v1634 = vunpack.c.l.b16 %v1625
        %v1635 = vunpack.c.l.b16 %v1626
        %v1636 = vunpack.c.l.b16 %v1627
        %v1637 = vunpack.c.l.b16 %v1628
        %v1638 = vpack.c.b16 %v1635, %v1634
        %v1639 = vpack.c.b16 %v1637, %v1636
        %v1643 = vsel %vm515, %v1624, 0
        %1645 = vmatprep.subr.bf16.mxu0 0
        %1646 = vmatpush1.bf16.msra.mxu0 %v1638
        %1647 = vmatprep.subr.bf16.mxu0 0
        %1648 = vmatpush1.bf16.msra.mxu0 %v1639
        %1649 = vmatprep.subr.bf16.mxu0 0
        %1650 = vmatpush1.bf16.msra.mxu0 0
        %1651 = vmatprep.subr.bf16.mxu0 0
        %1652 = vmatpush1.bf16.msra.mxu0 0
        %1653 = vmatprep.subr.bf16.mxu0 0
        %1654 = vmatpush1.bf16.msra.mxu0 0
        %1655 = vmatprep.subr.bf16.mxu0 0
        %1656 = vmatpush1.bf16.msra.mxu0 0
        %1657 = vmatprep.subr.bf16.mxu0 0
        %1658 = vmatpush1.bf16.msra.mxu0 0
        %1659 = vmatprep.subr.bf16.mxu0 0
        %1660 = vmatpush1.bf16.msra.mxu0 0
        %1661 = vmatprep.subr.bf16.mxu0 0
        %1662 = vmatpush1.bf16.msra.mxu0 0
        %1663 = vmatprep.subr.bf16.mxu0 0
        %1664 = vmatpush1.bf16.msra.mxu0 0
        %1665 = vmatprep.subr.bf16.mxu0 0
        %1666 = vmatpush1.bf16.msra.mxu0 0
        %1667 = vmatprep.subr.bf16.mxu0 0
        %1668 = vmatpush1.bf16.msra.mxu0 0
        %1669 = vmatprep.subr.bf16.mxu0 0
        %1670 = vmatpush1.bf16.msra.mxu0 0
        %1671 = vmatprep.subr.bf16.mxu0 0
        %1672 = vmatpush1.bf16.msra.mxu0 0
        %1673 = vmatprep.subr.bf16.mxu0 0
        %1674 = vmatpush1.bf16.msra.mxu0 0
        %1675 = vmatprep.subr.bf16.mxu0 0
        %1676 = vmatpush1.bf16.msra.mxu0 0
        %1677 = vmatprep.mubr.bf16.mxu0 0
        %1678 = vmatmul.mubr.bf16.gmra.mrb[0].mxu0 %v1643
        %v1679 = vpop.f32.mrb[0].mxu0
        %v1680 = vadd.f32 %v1629, %v1679
        %v1681 = vpop.f32.mrb[0].mxu0
        %v1682 = vpop.f32.mrb[0].mxu0
        %v1683 = vpop.f32.mrb[0].mxu0
        %1684 = vdwg.mxu0
        %v1685 = vtanh.pop %v1680
        %v1686 = vpack.c.bf16 %v1685, %v1685
        %v1687 = vld [vmem:[%s14] sm:$0xf]
        %v1688 = vld [vmem:[%s14 + $0x4] sm:$0xf]
        %v1689 = vld [vmem:[%s14 + $0x8] sm:$0xf]
        %v1690 = vld [vmem:[%s14 + $0xc] sm:$0xf]
        %v1691 = vld [vmem:[%s15] sm:$0x1]
        %v1696 = vunpack.c.l.b16 %v1687
        %v1697 = vunpack.c.l.b16 %v1688
        %v1698 = vunpack.c.l.b16 %v1689
        %v1699 = vunpack.c.l.b16 %v1690
        %v1700 = vpack.c.b16 %v1697, %v1696
        %v1701 = vpack.c.b16 %v1699, %v1698
        %v1705 = vsel %vm515, %v1686, 0
        %1707 = vmatprep.subr.bf16.mxu0 0
        %1708 = vmatpush1.bf16.msra.mxu0 %v1700
        %1709 = vmatprep.subr.bf16.mxu0 0
        %1710 = vmatpush1.bf16.msra.mxu0 %v1701
        %1711 = vmatprep.subr.bf16.mxu0 0
        %1712 = vmatpush1.bf16.msra.mxu0 0
        %1713 = vmatprep.subr.bf16.mxu0 0
        %1714 = vmatpush1.bf16.msra.mxu0 0
        %1715 = vmatprep.subr.bf16.mxu0 0
        %1716 = vmatpush1.bf16.msra.mxu0 0
        %1717 = vmatprep.subr.bf16.mxu0 0
        %1718 = vmatpush1.bf16.msra.mxu0 0
        %1719 = vmatprep.subr.bf16.mxu0 0
        %1720 = vmatpush1.bf16.msra.mxu0 0
        %1721 = vmatprep.subr.bf16.mxu0 0
        %1722 = vmatpush1.bf16.msra.mxu0 0
        %1723 = vmatprep.subr.bf16.mxu0 0
        %1724 = vmatpush1.bf16.msra.mxu0 0
        %1725 = vmatprep.subr.bf16.mxu0 0
        %1726 = vmatpush1.bf16.msra.mxu0 0
        %1727 = vmatprep.subr.bf16.mxu0 0
        %1728 = vmatpush1.bf16.msra.mxu0 0
        %1729 = vmatprep.subr.bf16.mxu0 0
        %1730 = vmatpush1.bf16.msra.mxu0 0
        %1731 = vmatprep.subr.bf16.mxu0 0
        %1732 = vmatpush1.bf16.msra.mxu0 0
        %1733 = vmatprep.subr.bf16.mxu0 0
        %1734 = vmatpush1.bf16.msra.mxu0 0
        %1735 = vmatprep.subr.bf16.mxu0 0
        %1736 = vmatpush1.bf16.msra.mxu0 0
        %1737 = vmatprep.subr.bf16.mxu0 0
        %1738 = vmatpush1.bf16.msra.mxu0 0
        %1739 = vmatprep.mubr.bf16.mxu0 0
        %1740 = vmatmul.mubr.bf16.gmra.mrb[0].mxu0 %v1705
        %v1741 = vpop.f32.mrb[0].mxu0
        %v1742 = vadd.f32 %v1691, %v1741
        %v1743 = vpop.f32.mrb[0].mxu0
        %v1744 = vpop.f32.mrb[0].mxu0
        %v1745 = vpop.f32.mrb[0].mxu0
        %1746 = vdwg.mxu0
        %v1747 = vlaneseq
        %v1748 = vshrl.u32 %v1747, 7
        %v1749 = vsub.s32 0, %v1748
        %v1750 = vrot.slane %v1742, %v1749
        %1751 = vst [vmem:[%s435] sm:$0xff] %v1750
        %s1752 = sand.u32 %s325, 1
        %s1753 = scalar_lea.sflag [#allocation8], %s1752
        %s1754 = sand.u32 %s325, 1
        %s1755 = smul.addr %s1754, 8
        %s1756 = scalar_lea.vmem [#allocation7], %s1755
        // Predicated region
        $region73: #{tpu_custom_call.1} parent=71 // pred_check
          %p1757 = pneg %p335
        $region74: #{tpu_custom_call.1} parent=71 // pred_check_branch
          %1759 = sbr.rel (%p1757) target = $region76
        $region75: #{tpu_custom_call.1} parent=71 // pred_region
          %s1761 = ssub.s32 128, 128
          %1762 = vsyncadd %s1753, %s1761
          %s1763 = smul.addr %s44, 128
          %s1764 = scalar_lea.hbm %s16, %s1763
          %s1766 = sshll.u32 %s1756, 4
          %s1767 = int_to_ptr.vmem [resolvable:$true] %s1766
          %1769 = dma.vmem_to_hbm [thread:$0]  %s1767, 128, %s1764, %s1753
        $region76: #{tpu_custom_call.1} parent=71 // pred_fallthru
          _
      $region72: #{tpu_custom_call.1} parent=5 // pred_fallthru
        _
      %p1770 = scmp.le.s32.totalorder 2, %s39
      // Predicated region
      $region77: #{tpu_custom_call.1} parent=5 // pred_check
        %p1771 = pneg %p1770
      $region78: #{tpu_custom_call.1} parent=5 // pred_check_branch
        %1773 = sbr.rel (%p1771) target = $region80
      $region79: #{tpu_custom_call.1} parent=5 // pred_region
        %s1774 = ssub.s32 %s39, 2
        // Predicated region
        $region81: #{tpu_custom_call.1} parent=79 // pred_check
          %p1775 = pneg %p341
        $region82: #{tpu_custom_call.1} parent=79 // pred_check_branch
          %1777 = sbr.rel (%p1775) target = $region84
        $region83: #{tpu_custom_call.1} parent=79 // pred_region
          %s1778 = sand.u32 %s326, 1
          %s1779 = scalar_lea.sflag [#allocation8], %s1778
          %s1780 = sand.u32 %s326, 1
          %s1781 = smul.addr %s1780, 8
          %s1782 = scalar_lea.vmem [#allocation7], %s1781
          %1783 = dma.done %s1779, 128
        $region84: #{tpu_custom_call.1} parent=79 // pred_fallthru
          _
      $region80: #{tpu_custom_call.1} parent=5 // pred_fallthru
        _
    $region6: #{tpu_custom_call.1} parent=1 // loop_footer
      %s43 = sadd.s32 1, %s39
    $region7: #{tpu_custom_call.1} parent=1 // loop_footer_branch
      %38 = sbr.rel target = $region3
    $region8: #{tpu_custom_call.1} parent=1 // loop_exit
      _
    %1784 = vsyncpa [#allocation8], 1
    %s1785 = scalar_lea.sflag [#allocation8], 1
    %1786 = vsyncpa %s1785, 1

</llo_original>
